<compile_context>
chip_gen: v6e
topology: v6e:2x2x1
jax: 0.10.0
libtpu: 0.0.40
codegen_flags: <defaults>
</compile_context>

<pallas_src>
import functools

import jax
import jax.numpy as jnp
from jax.experimental import pallas as pl
from jax.experimental.pallas import tpu as pltpu

EPS = 1e-5
LANE = 128
VMEM_LIMIT = 32 * 1024 * 1024          # raise v5e's 16 MiB default scoped VMEM
FUSED_VMEM_BUDGET = 20 * 1024 * 1024   # fused path only if everything fits here
TILE_BUDGET = 8 * 1024 * 1024          # double-buffered per-step block budget


def _round_up(x, m):
    return (x + m - 1) // m * m


def _pick_tile_m(M, K, OCp, itemsize):
    """Largest M tile whose double-buffered blocks fit the per-step budget."""
    m8 = _round_up(max(M, 8), 8)
    for tm in (1024, 512, 256, 128):
        if tm <= m8 and 2 * tm * (K + OCp) * itemsize <= TILE_BUDGET:
            return tm
    return min(m8, 128)


# --------------------------- fully fused kernel ---------------------------- #
def _fused_kernel(patches_ref, w_ref, gb_ref, o_ref, y_ref, sum_ref, ss_ref,
                  *, m_true, m_pad, tm):
    phase = pl.program_id(0)
    m = pl.program_id(1)
    row0 = pl.multiple_of(m * tm, tm)

    @pl.when(phase == 0)
    def _stats_phase():
        @pl.when(m == 0)
        def _init():
            sum_ref[...] = jnp.zeros_like(sum_ref)

        y = jnp.dot(patches_ref[...], w_ref[...],
                    preferred_element_type=jnp.float32)            # [tm, OCp]
        y_ref[pl.ds(row0, tm), :] = y
        sum_ref[...] += jnp.sum(y, axis=0, keepdims=True)

        @pl.when(m == pl.num_programs(1) - 1)
        def _finalize():
            inv_m = 1.0 / m_true
            mean = sum_ref[...] * inv_m                            # [1, OCp]
            diff = y_ref[...] - mean                               # [Mp, OCp]
            ssq = jnp.sum(diff * diff, axis=0, keepdims=True)
            # zero-padded rows contributed mean^2 each; remove them exactly
            ssq = ssq - m_pad * (mean * mean)
            var = jnp.maximum(ssq * inv_m, 0.0)
            scale = gb_ref[0:1, :] * jax.lax.rsqrt(var + EPS)
            ss_ref[0:1, :] = scale
            ss_ref[1:2, :] = gb_ref[1:2, :] - mean * scale

    @pl.when(phase == 1)
    def _apply_phase():
        y = y_ref[pl.ds(row0, tm), :]
        o_ref[...] = jnp.maximum(y * ss_ref[0:1, :] + ss_ref[1:2, :], 0.0)


# -------------------- two-pass fallback (large problems) ------------------- #
def _stats_kernel(patches_ref, w_ref, gb_ref, y_ref, ss_ref, sum_ref, sumsq_ref,
                  *, m_true):
    @pl.when(pl.program_id(0) == 0)
    def _init():
        sum_ref[...] = jnp.zeros_like(sum_ref)
        sumsq_ref[...] = jnp.zeros_like(sumsq_ref)

    y = jnp.dot(patches_ref[...], w_ref[...], preferred_element_type=jnp.float32)
    y_ref[...] = y                                  # persist pre-BN conv output
    sum_ref[...] += jnp.sum(y, axis=0, keepdims=True)
    sumsq_ref[...] += jnp.sum(y * y, axis=0, keepdims=True)

    @pl.when(pl.program_id(0) == pl.num_programs(0) - 1)
    def _finalize():
        inv_m = 1.0 / m_true
        mean = sum_ref[...] * inv_m
        var = jnp.maximum(sumsq_ref[...] * inv_m - mean * mean, 0.0)
        scale = gb_ref[0:1, :] * jax.lax.rsqrt(var + EPS)
        ss_ref[0:1, :] = scale
        ss_ref[1:2, :] = gb_ref[1:2, :] - mean * scale


def _apply_kernel(y_ref, ss_ref, o_ref):
    o_ref[...] = jnp.maximum(y_ref[...] * ss_ref[0:1, :] + ss_ref[1:2, :], 0.0)


# --------------------------------- wrapper --------------------------------- #
def conv_bn_relu(x, weight, bias, gamma, beta, stride, padding,
                 mxu_dtype=jnp.float32, force_two_pass=False):
    """x: [N, C, H, W] (NCHW, like PyTorch). weight: [OC, C, KH, KW]."""
    del bias  # cancels exactly under training-mode BatchNorm (mean subtraction)

    N, C, H, W = x.shape
    OC, _, KH, KW = weight.shape
    OH = (H + 2 * padding - KH) // stride + 1
    OW = (W + 2 * padding - KW) // stride + 1

    # ---- glue: im2col (NCHW -> [M, K], K ordered (c, kh, kw)) ----
    # TODO(synk): fuse into the kernel via a (kh, kw) K-reduction grid axis over
    # a padded NHWC input to avoid the KH*KW-fold HBM materialization.
    xpad = jnp.pad(x, ((0, 0), (0, 0), (padding, padding), (padding, padding)))
    cols = [xpad[:, :, kh:kh + OH * stride:stride, kw:kw + OW * stride:stride]
            for kh in range(KH) for kw in range(KW)]        # each (N, C, OH, OW)
    patches = jnp.stack(cols, axis=-1)                      # (N, C, OH, OW, KH*KW)
    patches = patches.transpose(0, 2, 3, 1, 4)              # (N, OH, OW, C, KH*KW)
    patches = patches.reshape(N * OH * OW, C * KH * KW)     # (M, K)

    M, K = patches.shape
    OCp = _round_up(OC, LANE)          # lane-dense weight columns / output stores
    itemsize = jnp.dtype(mxu_dtype).itemsize
    TM = _pick_tile_m(M, K, OCp, itemsize)
    n_tiles = (M + TM - 1) // TM
    Mp = n_tiles * TM

    # K stays unpadded (full-dim blocks are legal); only pad rows / out channels.
    patches_p = jnp.pad(patches.astype(mxu_dtype), ((0, Mp - M), (0, 0)))
    w_p = jnp.pad(weight.reshape(OC, K).T.astype(mxu_dtype),
                  ((0, 0), (0, OCp - OC)))                             # (K, OCp)
    gb = jnp.pad(jnp.stack([gamma, beta]).astype(jnp.float32),
                 ((0, 0), (0, OCp - OC)))                              # (2, OCp)

    f32 = jnp.float32
    fused_bytes = ((Mp * OCp + 3 * OCp) * 4
                   + 2 * (TM * K + K * OCp) * itemsize
                   + 2 * (TM * OCp + 2 * OCp) * 4)
    use_fused = (not force_two_pass) and fused_bytes <= FUSED_VMEM_BUDGET

    if use_fused:
        # single call: phase 0 = conv + stats (y resident in VMEM),
        #              phase 1 = elementwise scale/shift + ReLU
        out2d = pl.pallas_call(
            functools.partial(_fused_kernel, m_true=float(M),
                              m_pad=float(Mp - M), tm=TM),
            out_shape=jax.ShapeDtypeStruct((Mp, OCp), f32),
            grid=(2, n_tiles),
            in_specs=[
                pl.BlockSpec((TM, K),
                             lambda p, m: (m * (1 - p) + (n_tiles - 1) * p, 0)),
                pl.BlockSpec((K, OCp), lambda p, m: (0, 0)),
                pl.BlockSpec((2, OCp), lambda p, m: (0, 0)),
            ],
            out_specs=pl.BlockSpec((TM, OCp), lambda p, m: (m * p, 0)),
            scratch_shapes=[
                pltpu.VMEM((Mp, OCp), f32),   # pre-BN conv output y
                pltpu.VMEM((1, OCp), f32),    # per-channel sum
                pltpu.VMEM((2, OCp), f32),    # fused (scale, shift)
            ],
            compiler_params=pltpu.CompilerParams(
                dimension_semantics=("arbitrary", "arbitrary"),
                vmem_limit_bytes=VMEM_LIMIT),
        )(patches_p, w_p, gb)
    else:
        # pass 1: conv tiles -> y (HBM) + fused per-channel (scale, shift)
        y2d, ss = pl.pallas_call(
            functools.partial(_stats_kernel, m_true=float(M)),
            out_shape=(jax.ShapeDtypeStruct((Mp, OCp), f32),
                       jax.ShapeDtypeStruct((2, OCp), f32)),
            grid=(n_tiles,),
            in_specs=[
                pl.BlockSpec((TM, K), lambda m: (m, 0)),
                pl.BlockSpec((K, OCp), lambda m: (0, 0)),
                pl.BlockSpec((2, OCp), lambda m: (0, 0)),
            ],
            out_specs=(pl.BlockSpec((TM, OCp), lambda m: (m, 0)),
                       pl.BlockSpec((2, OCp), lambda m: (0, 0))),
            scratch_shapes=[pltpu.VMEM((1, OCp), f32),
                            pltpu.VMEM((1, OCp), f32)],
            compiler_params=pltpu.CompilerParams(
                dimension_semantics=("arbitrary",),
                vmem_limit_bytes=VMEM_LIMIT),
        )(patches_p, w_p, gb)

        # pass 2: pure elementwise scale/shift + ReLU, in place on y
        out2d = pl.pallas_call(
            _apply_kernel,
            out_shape=jax.ShapeDtypeStruct((Mp, OCp), f32),
            grid=(n_tiles,),
            in_specs=[
                pl.BlockSpec((TM, OCp), lambda m: (m, 0)),
                pl.BlockSpec((2, OCp), lambda m: (0, 0)),
            ],
            out_specs=pl.BlockSpec((TM, OCp), lambda m: (m, 0)),
            input_output_aliases={0: 0},
            compiler_params=pltpu.CompilerParams(
                dimension_semantics=("parallel",),
                vmem_limit_bytes=VMEM_LIMIT),
        )(y2d, ss)

    # slice padding off, back to NCHW (PyTorch layout)
    return out2d[:M, :OC].reshape(N, OH, OW, OC).transpose(0, 3, 1, 2)


def _reference(x, weight, bias, gamma, beta, stride, padding):
    y = jax.lax.conv_general_dilated(
        x, weight, window_strides=(stride, stride),
        padding=[(padding, padding), (padding, padding)],
        dimension_numbers=("NCHW", "OIHW", "NCHW"),
    ) + bias.reshape(1, -1, 1, 1)
    mean = jnp.mean(y, axis=(0, 2, 3), keepdims=True)
    var = jnp.mean((y - mean) ** 2, axis=(0, 2, 3), keepdims=True)
    yn = (y - mean) * jax.lax.rsqrt(var + EPS)
    yn = yn * gamma.reshape(1, -1, 1, 1) + beta.reshape(1, -1, 1, 1)
    return jnp.maximum(yn, 0.0)


if __name__ == "__main__":
    # MyModule(in_channels=4, out_channels=8, kernel_size=3, stride=1, padding=1)
    in_channels, out_channels, kernel_size, stride, padding = 4, 8, 3, 1, 1
    N, H, W = 2, 16, 16

    key = jax.random.PRNGKey(0)
    kx, kw_key, kb = jax.random.split(key, 3)
    x = jax.random.normal(kx, (N, in_channels, H, W), dtype=jnp.float32)

    fan_in = in_channels * kernel_size * kernel_size
    bound = 1.0 / (fan_in ** 0.5)
    weight = jax.random.uniform(
        kw_key, (out_channels, in_channels, kernel_size, kernel_size),
        minval=-bound, maxval=bound, dtype=jnp.float32)
    bias = jax.random.uniform(kb, (out_channels,), minval=-bound, maxval=bound,
                              dtype=jnp.float32)
    gamma = jnp.ones((out_channels,), jnp.float32)   # BatchNorm2d weight init
    beta = jnp.zeros((out_channels,), jnp.float32)   # BatchNorm2d bias init

    run = jax.jit(conv_bn_relu,
                  static_argnames=("stride", "padding", "mxu_dtype",
                                   "force_two_pass"))

    ref = _reference(x, weight, bias, gamma, beta, stride, padding)

    # main (fully fused, single pallas_call) path
    out = jax.block_until_ready(run(x, weight, bias, gamma, beta,
                                    stride=stride, padding=padding))
    assert out.shape == (N, out_channels, H, W)
    assert jnp.allclose(out, ref, atol=1e-4, rtol=1e-4), "fused path mismatch"

    # large-problem fallback path (y persisted to HBM, elementwise second pass)
    out2 = jax.block_until_ready(run(x, weight, bias, gamma, beta,
                                     stride=stride, padding=padding,
                                     force_two_pass=True))
    assert jnp.allclose(out2, ref, atol=1e-4, rtol=1e-4), "two-pass path mismatch"

    print("KERNEL_OK")
</pallas_src>

<mosaic_0001>
module attributes {stable_mosaic.version = 11 : i64} {
  func.func @_fused_kernel(%arg0: i32, %arg1: i32, %arg2: memref<512x36xf32, #tpu.memory_space<vmem>>, %arg3: memref<36x128xf32, #tpu.memory_space<vmem>>, %arg4: memref<2x128xf32, #tpu.memory_space<vmem>>, %arg5: memref<512x128xf32, #tpu.memory_space<vmem>>, %arg6: memref<512x128xf32, #tpu.memory_space<vmem>>, %arg7: memref<1x128xf32, #tpu.memory_space<vmem>>, %arg8: memref<2x128xf32, #tpu.memory_space<vmem>>) attributes {dimension_semantics = [#tpu.dimension_semantics<arbitrary>, #tpu.dimension_semantics<arbitrary>], iteration_bounds = array<i64: 2, 1>, scalar_prefetch = 0 : i64, scratch_operands = 3 : i64, tpu.core_type = #tpu.core_type<tc>, window_params = [{transform_indices = @transform_0, window_bounds = array<i64: 512, 36>}, {pipeline_mode = #tpu.pipeline_mode<synchronous>, transform_indices = @transform_1, window_bounds = array<i64: 36, 128>}, {pipeline_mode = #tpu.pipeline_mode<synchronous>, transform_indices = @transform_2, window_bounds = array<i64: 2, 128>}, {transform_indices = @transform_3, window_bounds = array<i64: 512, 128>}]} {
    %c512_i32 = arith.constant 512 : i32
    %0 = arith.muli %arg1, %c512_i32 : i32
    %1 = tpu.assume_multiple %0, 512 : i32
    %c0_i32 = arith.constant 0 : i32
    %2 = arith.cmpi eq, %arg0, %c0_i32 : i32
    %3 = arith.extui %2 : i1 to i32
    %c0_i32_0 = arith.constant 0 : i32
    %4 = arith.cmpi ne, %3, %c0_i32_0 : i32
    scf.if %4 {
      %c0_i32_2 = arith.constant 0 : i32
      %8 = arith.cmpi eq, %arg1, %c0_i32_2 : i32
      %9 = arith.extui %8 : i1 to i32
      %c0_i32_3 = arith.constant 0 : i32
      %10 = arith.cmpi ne, %9, %c0_i32_3 : i32
      scf.if %10 {
        %cst_15 = arith.constant 0.000000e+00 : f32
        %24 = vector.broadcast %cst_15 : f32 to vector<1x128xf32>
        %c0_16 = arith.constant 0 : index
        %c0_17 = arith.constant 0 : index
        %25 = vector.load %arg7[%c0_16, %c0_17] : memref<1x128xf32, #tpu.memory_space<vmem>>, vector<1x128xf32>
        tpu.vector_store %arg7[%c0_16, %c0_17], %24 {strides = array<i32>} : memref<1x128xf32, #tpu.memory_space<vmem>>, vector<1x128xf32>,
      } else {
      }
      %c0 = arith.constant 0 : index
      %c0_4 = arith.constant 0 : index
      %11 = vector.load %arg2[%c0, %c0_4] : memref<512x36xf32, #tpu.memory_space<vmem>>, vector<512x36xf32>
      %c0_5 = arith.constant 0 : index
      %c0_6 = arith.constant 0 : index
      %12 = vector.load %arg3[%c0_5, %c0_6] : memref<36x128xf32, #tpu.memory_space<vmem>>, vector<36x128xf32>
      %cst = arith.constant dense<0.000000e+00> : vector<512x128xf32>
      %13 = tpu.matmul %11, %12, %cst {dimension_numbers = #tpu.dot_dimension_numbers<[1], [0], [0], [1], [0, 0, 1, 1], [], []>} : vector<512x36xf32>, vector<36x128xf32>, vector<512x128xf32> -> vector<512x128xf32>
      %14 = arith.index_cast %1 : i32 to index
      %c0_7 = arith.constant 0 : index
      %15 = vector.load %arg6[%14, %c0_7] : memref<512x128xf32, #tpu.memory_space<vmem>>, vector<512x128xf32>
      tpu.vector_store %arg6[%14, %c0_7], %13 {strides = array<i32>} : memref<512x128xf32, #tpu.memory_space<vmem>>, vector<512x128xf32>,
      %c0_8 = arith.constant 0 : index
      %c0_9 = arith.constant 0 : index
      %16 = vector.load %arg7[%c0_8, %c0_9] : memref<1x128xf32, #tpu.memory_space<vmem>>, vector<1x128xf32>
      %cst_10 = arith.constant dense<0.000000e+00> : vector<128xf32>
      %17 = vector.multi_reduction <add>, %13, %cst_10 [0] : vector<512x128xf32> to vector<128xf32>
      %18 = vector.shape_cast %17 : vector<128xf32> to vector<1x128xf32>
      %19 = arith.addf %16, %18 : vector<1x128xf32>
      %c0_11 = arith.constant 0 : index
      %c0_12 = arith.constant 0 : index
      %20 = vector.load %arg7[%c0_11, %c0_12] : memref<1x128xf32, #tpu.memory_space<vmem>>, vector<1x128xf32>
      tpu.vector_store %arg7[%c0_11, %c0_12], %19 {strides = array<i32>} : memref<1x128xf32, #tpu.memory_space<vmem>>, vector<1x128xf32>,
      %c0_i32_13 = arith.constant 0 : i32
      %21 = arith.cmpi eq, %arg1, %c0_i32_13 : i32
      %22 = arith.extui %21 : i1 to i32
      %c0_i32_14 = arith.constant 0 : i32
      %23 = arith.cmpi ne, %22, %c0_i32_14 : i32
      scf.if %23 {
        %c0_15 = arith.constant 0 : index
        %c0_16 = arith.constant 0 : index
        %24 = vector.load %arg7[%c0_15, %c0_16] : memref<1x128xf32, #tpu.memory_space<vmem>>, vector<1x128xf32>
        %cst_17 = arith.constant 0.001953125 : f32
        %25 = vector.broadcast %cst_17 : f32 to vector<1x128xf32>
        %26 = arith.mulf %24, %25 : vector<1x128xf32>
        %c0_18 = arith.constant 0 : index
        %c0_19 = arith.constant 0 : index
        %27 = vector.load %arg6[%c0_18, %c0_19] : memref<512x128xf32, #tpu.memory_space<vmem>>, vector<512x128xf32>
        %28 = vector.broadcast %26 : vector<1x128xf32> to vector<512x128xf32>
        %29 = arith.subf %27, %28 : vector<512x128xf32>
        %30 = arith.mulf %29, %29 : vector<512x128xf32>
        %cst_20 = arith.constant dense<0.000000e+00> : vector<128xf32>
        %31 = vector.multi_reduction <add>, %30, %cst_20 [0] : vector<512x128xf32> to vector<128xf32>
        %32 = vector.shape_cast %31 : vector<128xf32> to vector<1x128xf32>
        %33 = arith.mulf %26, %26 : vector<1x128xf32>
        %cst_21 = arith.constant 0.000000e+00 : f32
        %34 = vector.broadcast %cst_21 : f32 to vector<1x128xf32>
        %35 = arith.mulf %34, %33 : vector<1x128xf32>
        %36 = arith.subf %32, %35 : vector<1x128xf32>
        %cst_22 = arith.constant 0.001953125 : f32
        %37 = vector.broadcast %cst_22 : f32 to vector<1x128xf32>
        %38 = arith.mulf %36, %37 : vector<1x128xf32>
        %cst_23 = arith.constant 0.000000e+00 : f32
        %39 = vector.broadcast %cst_23 : f32 to vector<1x128xf32>
        %40 = arith.maximumf %38, %39 : vector<1x128xf32>
        %c0_24 = arith.constant 0 : index
        %c0_25 = arith.constant 0 : index
        %41 = vector.load %arg4[%c0_24, %c0_25] : memref<2x128xf32, #tpu.memory_space<vmem>>, vector<1x128xf32>
        %cst_26 = arith.constant 9.99999974E-6 : f32
        %42 = vector.broadcast %cst_26 : f32 to vector<1x128xf32>
        %43 = arith.addf %40, %42 : vector<1x128xf32>
        %44 = math.rsqrt %43 : vector<1x128xf32>
        %45 = arith.mulf %41, %44 : vector<1x128xf32>
        %c0_27 = arith.constant 0 : index
        %c0_28 = arith.constant 0 : index
        %46 = vector.load %arg8[%c0_27, %c0_28] : memref<2x128xf32, #tpu.memory_space<vmem>>, vector<1x128xf32>
        tpu.vector_store %arg8[%c0_27, %c0_28], %45 {strides = array<i32>} : memref<2x128xf32, #tpu.memory_space<vmem>>, vector<1x128xf32>,
        %c1 = arith.constant 1 : index
        %c0_29 = arith.constant 0 : index
        %47 = vector.load %arg4[%c1, %c0_29] : memref<2x128xf32, #tpu.memory_space<vmem>>, vector<1x128xf32>
        %48 = arith.mulf %26, %45 : vector<1x128xf32>
        %49 = arith.subf %47, %48 : vector<1x128xf32>
        %c1_30 = arith.constant 1 : index
        %c0_31 = arith.constant 0 : index
        %50 = vector.load %arg8[%c1_30, %c0_31] : memref<2x128xf32, #tpu.memory_space<vmem>>, vector<1x128xf32>
        tpu.vector_store %arg8[%c1_30, %c0_31], %49 {strides = array<i32>} : memref<2x128xf32, #tpu.memory_space<vmem>>, vector<1x128xf32>,
      } else {
      }
    } else {
    }
    %c1_i32 = arith.constant 1 : i32
    %5 = arith.cmpi eq, %arg0, %c1_i32 : i32
    %6 = arith.extui %5 : i1 to i32
    %c0_i32_1 = arith.constant 0 : i32
    %7 = arith.cmpi ne, %6, %c0_i32_1 : i32
    scf.if %7 {
      %8 = arith.index_cast %1 : i32 to index
      %c0 = arith.constant 0 : index
      %9 = vector.load %arg6[%8, %c0] : memref<512x128xf32, #tpu.memory_space<vmem>>, vector<512x128xf32>
      %c0_2 = arith.constant 0 : index
      %c0_3 = arith.constant 0 : index
      %10 = vector.load %arg8[%c0_2, %c0_3] : memref<2x128xf32, #tpu.memory_space<vmem>>, vector<1x128xf32>
      %11 = vector.broadcast %10 : vector<1x128xf32> to vector<512x128xf32>
      %12 = arith.mulf %9, %11 : vector<512x128xf32>
      %c1 = arith.constant 1 : index
      %c0_4 = arith.constant 0 : index
      %13 = vector.load %arg8[%c1, %c0_4] : memref<2x128xf32, #tpu.memory_space<vmem>>, vector<1x128xf32>
      %14 = vector.broadcast %13 : vector<1x128xf32> to vector<512x128xf32>
      %15 = arith.addf %12, %14 : vector<512x128xf32>
      %cst = arith.constant 0.000000e+00 : f32
      %16 = vector.broadcast %cst : f32 to vector<512x128xf32>
      %17 = arith.maximumf %15, %16 : vector<512x128xf32>
      %c0_5 = arith.constant 0 : index
      %c0_6 = arith.constant 0 : index
      %18 = vector.load %arg5[%c0_5, %c0_6] : memref<512x128xf32, #tpu.memory_space<vmem>>, vector<512x128xf32>
      tpu.vector_store %arg5[%c0_5, %c0_6], %17 {strides = array<i32>} : memref<512x128xf32, #tpu.memory_space<vmem>>, vector<512x128xf32>,
    } else {
    }
    return
  }
  func.func @transform_0(%arg0: i32, %arg1: i32) -> (i32, i32) {
    %c1_i32 = arith.constant 1 : i32
    %0 = arith.subi %c1_i32, %arg0 : i32
    %1 = arith.muli %arg1, %0 : i32
    %c0_i32 = arith.constant 0 : i32
    %2 = arith.muli %c0_i32, %arg0 : i32
    %3 = arith.addi %1, %2 : i32
    %c0_i32_0 = arith.constant 0 : i32
    %c0_i32_1 = arith.constant 0 : i32
    return %3, %c0_i32_0 : i32, i32
  }
  func.func @transform_1(%arg0: i32, %arg1: i32) -> (i32, i32) {
    %c0_i32 = arith.constant 0 : i32
    %c0_i32_0 = arith.constant 0 : i32
    %c0_i32_1 = arith.constant 0 : i32
    return %c0_i32, %c0_i32_0 : i32, i32
  }
  func.func @transform_2(%arg0: i32, %arg1: i32) -> (i32, i32) {
    %c0_i32 = arith.constant 0 : i32
    %c0_i32_0 = arith.constant 0 : i32
    %c0_i32_1 = arith.constant 0 : i32
    return %c0_i32, %c0_i32_0 : i32, i32
  }
  func.func @transform_3(%arg0: i32, %arg1: i32) -> (i32, i32) {
    %0 = arith.muli %arg1, %arg0 : i32
    %c0_i32 = arith.constant 0 : i32
    %c0_i32_0 = arith.constant 0 : i32
    return %0, %c0_i32 : i32, i32
  }
}

</mosaic_0001>

<llo_original>
// kernel: conv_bn_relu.1
$region0: #{conv_bn_relu.1}
  #allocation0 [shape = 'u32[]', space=smem, size = 0x4, offset = 0x4, fixed_abs, tag = 'smem constant byte address 0x4 - core index']
  #allocation1 [shape = 'u32[144,128]{1,0:T(1,128)}', space=vmem, size = 0x12000, scoped, tag = 'internal scratch']
  #allocation2 [shape = 'f32[512,128]{1,0:T(8,128)}', space=vmem, size = 0x40000, scoped, tag = 'scratch operand']
  #allocation3 [shape = 'f32[1,128]{1,0:T(1,128)}', space=vmem, size = 0x200, scoped, tag = 'scratch operand']
  #allocation4 [shape = 'f32[2,128]{1,0:T(2,128)}', space=vmem, size = 0x400, scoped, tag = 'scratch operand']
  %s0 = inlined_call_operand.vmem [shape: f32[512,36], index: 0, kind: input, shape index: {}]
  %s1 = inlined_call_operand.vmem [shape: f32[36,128], index: 1, kind: input, shape index: {}]
  %s2 = inlined_call_operand.vmem [shape: f32[2,128], index: 2, kind: input, shape index: {}]
  %s3 = inlined_call_operand.vmem [shape: f32[512,128], index: 3, kind: output, shape index: {}]
  %s4 = sld [smem:[#allocation0]]
  $region61: #{conv_bn_relu.1} parent=0
    _
  %s6 = ssub.s32 1, %s4
  %s7 = scalar_select 0, %s6, %s4
  loop: start=0, step=1, limit=4
  $region2: #{conv_bn_relu.1} parent=0 // loop_pre_header
    _
  $region3: #{conv_bn_relu.1} parent=0 // loop_header
    %s9 = sphi 0, %s13
    %p10 = scmp.ge.s32.totalorder %s9, 4
    %s16 = sphi 0, %s28
    %s17 = sphi 0, %s24
    %s18 = sphi 0, %s16
    %s19 = sphi 0, %s17
    %s20 = sphi 0, %s18
    %s21 = sphi 0, %s19
    %s35 = sphi 0, %s37
    %s38 = sphi 0, %s35
    %s39 = sphi 0, %s38
    %s55 = sphi 0, %s39
    %s59 = sphi 0, %s59
    %s61 = sphi 0, %s59
    %s62 = sphi 0, %s61
    %s76 = sphi 0, %s62
    %s80 = sphi 0, %s80
    %s82 = sphi 0, %s80
    %s83 = sphi 0, %s82
    %s97 = sphi 0, %s83
    %s105 = sphi 0, %s107
    %s108 = sphi 0, %s105
    %s109 = sphi 0, %s108
    %s125 = sphi 0, %s109
  $region4: #{conv_bn_relu.1} parent=0 // loop_header_branch
    %12 = sbr.rel (%p10) target = $region8
  $region5: #{conv_bn_relu.1} parent=0 // loop_body
    %s14 = ssub.s32 %s9, 1
    %s15 = ssub.s32 %s9, 2
    %s22 = sadd.s32 1, %s17
    %p23 = scmp.ge.s32.totalorder %s22, 1
    %s24 = scalar_select %p23, 0, %s22
    %s25 = sadd.s32 1, %s16
    %s26 = scalar_select %p23, %s25, %s16
    %p27 = scmp.ge.s32.totalorder %s26, 2
    %s28 = scalar_select %p27, 0, %s26
    %s29 = ssub.s32 1, %s16
    %s30 = smul.u32 %s17, %s29
    %s31 = ssub.s32 1, %s28
    %s32 = smul.u32 %s24, %s31
    %s33 = ssub.s32 %s30, %s32
    %p34 = scmp.eq.s32.totalorder %s33, 0
    %s36 = sadd.s32 %s35, 1
    %s37 = scalar_select %p34, %s35, %s36
    %p40 = pneg %p34
    %p41 = scmp.eq.s32.totalorder %s9, 1
    %p42 = por %p40, %p41
    %p43 = scmp.ne.s32.totalorder %s35, %s38
    %p44 = scmp.eq.s32.totalorder %s9, 0
    %p45 = por %p43, %p44
    %p46 = scmp.ne.s32.totalorder %s35, %s38
    %p47 = scmp.eq.s32.totalorder %s14, 1
    %p48 = por %p46, %p47
    %p49 = scmp.ne.s32.totalorder %s38, %s39
    %p50 = scmp.eq.s32.totalorder %s14, 0
    %p51 = por %p49, %p50
    %p52 = scmp.ne.s32.totalorder %s38, %s39
    %p53 = scmp.eq.s32.totalorder %s15, 1
    %p54 = por %p52, %p53
    %p56 = scmp.ne.s32.totalorder %s39, %s55
    %p57 = scmp.eq.s32.totalorder %s15, 0
    %p58 = por %p56, %p57
    %s60 = sadd.s32 %s59, 1
    %p63 = scmp.eq.s32.totalorder %s9, 1
    %p64 = scmp.ne.s32.totalorder %s59, %s61
    %p65 = scmp.eq.s32.totalorder %s9, 0
    %p66 = por %p64, %p65
    %p67 = scmp.ne.s32.totalorder %s59, %s61
    %p68 = scmp.eq.s32.totalorder %s14, 1
    %p69 = por %p67, %p68
    %p70 = scmp.ne.s32.totalorder %s61, %s62
    %p71 = scmp.eq.s32.totalorder %s14, 0
    %p72 = por %p70, %p71
    %p73 = scmp.ne.s32.totalorder %s61, %s62
    %p74 = scmp.eq.s32.totalorder %s15, 1
    %p75 = por %p73, %p74
    %p77 = scmp.ne.s32.totalorder %s62, %s76
    %p78 = scmp.eq.s32.totalorder %s15, 0
    %p79 = por %p77, %p78
    %s81 = sadd.s32 %s80, 1
    %p84 = scmp.eq.s32.totalorder %s9, 1
    %p85 = scmp.ne.s32.totalorder %s80, %s82
    %p86 = scmp.eq.s32.totalorder %s9, 0
    %p87 = por %p85, %p86
    %p88 = scmp.ne.s32.totalorder %s80, %s82
    %p89 = scmp.eq.s32.totalorder %s14, 1
    %p90 = por %p88, %p89
    %p91 = scmp.ne.s32.totalorder %s82, %s83
    %p92 = scmp.eq.s32.totalorder %s14, 0
    %p93 = por %p91, %p92
    %p94 = scmp.ne.s32.totalorder %s82, %s83
    %p95 = scmp.eq.s32.totalorder %s15, 1
    %p96 = por %p94, %p95
    %p98 = scmp.ne.s32.totalorder %s83, %s97
    %p99 = scmp.eq.s32.totalorder %s15, 0
    %p100 = por %p98, %p99
    %s101 = smul.u32 %s17, %s16
    %s102 = smul.u32 %s24, %s28
    %s103 = ssub.s32 %s101, %s102
    %p104 = scmp.eq.s32.totalorder %s103, 0
    %s106 = sadd.s32 %s105, 1
    %s107 = scalar_select %p104, %s105, %s106
    %p110 = pneg %p104
    %p111 = scmp.eq.s32.totalorder %s9, 1
    %p112 = por %p110, %p111
    %p113 = scmp.ne.s32.totalorder %s105, %s108
    %p114 = scmp.eq.s32.totalorder %s9, 0
    %p115 = por %p113, %p114
    %p116 = scmp.ne.s32.totalorder %s105, %s108
    %p117 = scmp.eq.s32.totalorder %s14, 1
    %p118 = por %p116, %p117
    %p119 = scmp.ne.s32.totalorder %s108, %s109
    %p120 = scmp.eq.s32.totalorder %s14, 0
    %p121 = por %p119, %p120
    %p122 = scmp.ne.s32.totalorder %s108, %s109
    %p123 = scmp.eq.s32.totalorder %s15, 1
    %p124 = por %p122, %p123
    %p126 = scmp.ne.s32.totalorder %s109, %s125
    %p127 = scmp.eq.s32.totalorder %s15, 0
    %p128 = por %p126, %p127
    %p129 = scmp.le.s32.totalorder 1, %s9
    %p130 = scmp.lt.s32.totalorder %s9, 3
    %p131 = pnand %p129, %p130
    %p132 = pneg %p131
    // Predicated region
    $region9: #{conv_bn_relu.1} parent=5 // pred_check
      _
    $region10: #{conv_bn_relu.1} parent=5 // pred_check_branch
      %134 = sbr.rel (%p131) target = $region12
    $region11: #{conv_bn_relu.1} parent=5 // pred_region
      %s135 = ssub.s32 %s9, 1
      // Predicated region
      $region13: #{conv_bn_relu.1} parent=11 // pred_check
        %p136 = pneg %p72
      $region14: #{conv_bn_relu.1} parent=11 // pred_check_branch
        %138 = sbr.rel (%p136) target = $region16
      $region15: #{conv_bn_relu.1} parent=11 // pred_region
        _
      $region16: #{conv_bn_relu.1} parent=11 // pred_fallthru
        _
      // Predicated region
      $region17: #{conv_bn_relu.1} parent=11 // pred_check
        %p139 = pneg %p93
      $region18: #{conv_bn_relu.1} parent=11 // pred_check_branch
        %141 = sbr.rel (%p139) target = $region20
      $region19: #{conv_bn_relu.1} parent=11 // pred_region
        _
      $region20: #{conv_bn_relu.1} parent=11 // pred_fallthru
        _
    $region12: #{conv_bn_relu.1} parent=5 // pred_fallthru
      _
    %p142 = scmp.lt.s32.totalorder %s9, 2
    // Predicated region
    $region21: #{conv_bn_relu.1} parent=5 // pred_check
      %p143 = pneg %p142
    $region22: #{conv_bn_relu.1} parent=5 // pred_check_branch
      %145 = sbr.rel (%p143) target = $region24
    $region23: #{conv_bn_relu.1} parent=5 // pred_region
      // Predicated region
      $region25: #{conv_bn_relu.1} parent=23 // pred_check
        %p146 = pneg %p45
      $region26: #{conv_bn_relu.1} parent=23 // pred_check_branch
        %148 = sbr.rel (%p146) target = $region28
      $region27: #{conv_bn_relu.1} parent=23 // pred_region
        %s149 = ssub.s32 1, %s16
        %s150 = smul.u32 %s17, %s149
        %s151 = smul.u32 64, %s150
        %p152 = scmp.lt.s32.totalorder %s151, 63
        %s153 = scalar_select %p152, %s151, 63
        %s154 = smul.addr %s153, 8
        %s155 = scalar_lea.vmem %s0, %s154
        %s156 = ssub.s32 1, %s16
        %s157 = smul.u32 %s17, %s156
        %s158 = smul.u32 64, %s157
      $region28: #{conv_bn_relu.1} parent=23 // pred_fallthru
        _
    $region24: #{conv_bn_relu.1} parent=5 // pred_fallthru
      _
    %p159 = scmp.le.s32.totalorder 1, %s9
    %p160 = scmp.lt.s32.totalorder %s9, 3
    %p161 = pnand %p159, %p160
    %p162 = pneg %p161
    // Predicated region
    $region29: #{conv_bn_relu.1} parent=5 // pred_check
      _
    $region30: #{conv_bn_relu.1} parent=5 // pred_check_branch
      %164 = sbr.rel (%p161) target = $region32
    $region31: #{conv_bn_relu.1} parent=5 // pred_region
      %s165 = ssub.s32 %s9, 1
      %s166 = ssub.s32 1, %s18
      %s167 = smul.u32 %s19, %s166
      %s168 = smul.u32 64, %s167
      %p169 = scmp.lt.s32.totalorder %s168, 63
      %s170 = scalar_select %p169, %s168, 63
      %s171 = smul.addr %s170, 8
      %s172 = scalar_lea.vmem %s0, %s171
      %p173 = pneg %p51
      %p174 = pneg %p48
      %p175 = pneg %p72
      %p176 = pneg %p69
      %p177 = pneg %p93
      %p178 = pneg %p90
      %p179 = pneg %p121
      %p180 = pneg %p118
      %s181 = smul.u32 %s19, %s18
      %s182 = smul.u32 64, %s181
      %p183 = scmp.lt.s32.totalorder %s182, 63
      %s184 = scalar_select %p183, %s182, 63
      %s185 = smul.addr %s184, 8
      %s186 = scalar_lea.vmem %s3, %s185
      %s187 = ssub.s32 1, %s18
      %s188 = smul.u32 %s19, %s187
      %s189 = smul.u32 64, %s188
      %p190 = scmp.lt.s32.totalorder %s189, 63
      %s191 = scalar_select %p190, %s189, 63
      %s192 = smul.addr %s191, 8
      %s193 = scalar_lea.vmem %s0, %s192
      %s194 = ssub.s32 1, %s18
      %s195 = smul.u32 %s19, %s194
      %s196 = smul.u32 64, %s195
      %s197 = smul.u32 %s19, %s18
      %s198 = smul.u32 64, %s197
      %p199 = scmp.lt.s32.totalorder %s198, 63
      %s200 = scalar_select %p199, %s198, 63
      %s201 = smul.addr %s200, 8
      %s202 = scalar_lea.vmem %s3, %s201
      %s203 = smul.u32 %s19, %s18
      %s204 = smul.u32 64, %s203
      %s205 = smul.u32 %s19, 512
      %p206 = scmp.eq.s32.totalorder %s18, 0
      // Predicated region
      $region33: #{conv_bn_relu.1} parent=31 // pred_check
        %p207 = pneg %p206
      $region34: #{conv_bn_relu.1} parent=31 // pred_check_branch
        %209 = sbr.rel (%p207) target = $region36
      $region35: #{conv_bn_relu.1} parent=31 // pred_region
        %p210 = scmp.eq.s32.totalorder %s19, 0
        // Predicated region
        $region37: #{conv_bn_relu.1} parent=35 // pred_check
          %p211 = pneg %p210
        $region38: #{conv_bn_relu.1} parent=35 // pred_check_branch
          %213 = sbr.rel (%p211) target = $region40
        $region39: #{conv_bn_relu.1} parent=35 // pred_region
          %214 = vst [vmem:[#allocation3] sm:$0x1] 0.0
        $region40: #{conv_bn_relu.1} parent=35 // pred_fallthru
          _
        %v215 = vld [vmem:[%s193] sm:$0xff]
        %v216 = vld [vmem:[%s193 + $0x8] sm:$0xff]
        %v217 = vld [vmem:[%s193 + $0x10] sm:$0xff]
        %v218 = vld [vmem:[%s193 + $0x18] sm:$0xff]
        %v219 = vld [vmem:[%s193 + $0x20] sm:$0xff]
        %v220 = vld [vmem:[%s193 + $0x28] sm:$0xff]
        %v221 = vld [vmem:[%s193 + $0x30] sm:$0xff]
        %v222 = vld [vmem:[%s193 + $0x38] sm:$0xff]
        %v223 = vld [vmem:[%s193 + $0x40] sm:$0xff]
        %v224 = vld [vmem:[%s193 + $0x48] sm:$0xff]
        %v225 = vld [vmem:[%s193 + $0x50] sm:$0xff]
        %v226 = vld [vmem:[%s193 + $0x58] sm:$0xff]
        %v227 = vld [vmem:[%s193 + $0x60] sm:$0xff]
        %v228 = vld [vmem:[%s193 + $0x68] sm:$0xff]
        %v229 = vld [vmem:[%s193 + $0x70] sm:$0xff]
        %v230 = vld [vmem:[%s193 + $0x78] sm:$0xff]
        %v231 = vld [vmem:[%s193 + $0x80] sm:$0xff]
        %v232 = vld [vmem:[%s193 + $0x88] sm:$0xff]
        %v233 = vld [vmem:[%s193 + $0x90] sm:$0xff]
        %v234 = vld [vmem:[%s193 + $0x98] sm:$0xff]
        %v235 = vld [vmem:[%s193 + $0xa0] sm:$0xff]
        %v236 = vld [vmem:[%s193 + $0xa8] sm:$0xff]
        %v237 = vld [vmem:[%s193 + $0xb0] sm:$0xff]
        %v238 = vld [vmem:[%s193 + $0xb8] sm:$0xff]
        %v239 = vld [vmem:[%s193 + $0xc0] sm:$0xff]
        %v240 = vld [vmem:[%s193 + $0xc8] sm:$0xff]
        %v241 = vld [vmem:[%s193 + $0xd0] sm:$0xff]
        %v242 = vld [vmem:[%s193 + $0xd8] sm:$0xff]
        %v243 = vld [vmem:[%s193 + $0xe0] sm:$0xff]
        %v244 = vld [vmem:[%s193 + $0xe8] sm:$0xff]
        %v245 = vld [vmem:[%s193 + $0xf0] sm:$0xff]
        %v246 = vld [vmem:[%s193 + $0xf8] sm:$0xff]
        %v247 = vld [vmem:[%s193 + $0x100] sm:$0xff]
        %v248 = vld [vmem:[%s193 + $0x108] sm:$0xff]
        %v249 = vld [vmem:[%s193 + $0x110] sm:$0xff]
        %v250 = vld [vmem:[%s193 + $0x118] sm:$0xff]
        %v251 = vld [vmem:[%s193 + $0x120] sm:$0xff]
        %v252 = vld [vmem:[%s193 + $0x128] sm:$0xff]
        %v253 = vld [vmem:[%s193 + $0x130] sm:$0xff]
        %v254 = vld [vmem:[%s193 + $0x138] sm:$0xff]
        %v255 = vld [vmem:[%s193 + $0x140] sm:$0xff]
        %v256 = vld [vmem:[%s193 + $0x148] sm:$0xff]
        %v257 = vld [vmem:[%s193 + $0x150] sm:$0xff]
        %v258 = vld [vmem:[%s193 + $0x158] sm:$0xff]
        %v259 = vld [vmem:[%s193 + $0x160] sm:$0xff]
        %v260 = vld [vmem:[%s193 + $0x168] sm:$0xff]
        %v261 = vld [vmem:[%s193 + $0x170] sm:$0xff]
        %v262 = vld [vmem:[%s193 + $0x178] sm:$0xff]
        %v263 = vld [vmem:[%s193 + $0x180] sm:$0xff]
        %v264 = vld [vmem:[%s193 + $0x188] sm:$0xff]
        %v265 = vld [vmem:[%s193 + $0x190] sm:$0xff]
        %v266 = vld [vmem:[%s193 + $0x198] sm:$0xff]
        %v267 = vld [vmem:[%s193 + $0x1a0] sm:$0xff]
        %v268 = vld [vmem:[%s193 + $0x1a8] sm:$0xff]
        %v269 = vld [vmem:[%s193 + $0x1b0] sm:$0xff]
        %v270 = vld [vmem:[%s193 + $0x1b8] sm:$0xff]
        %v271 = vld [vmem:[%s193 + $0x1c0] sm:$0xff]
        %v272 = vld [vmem:[%s193 + $0x1c8] sm:$0xff]
        %v273 = vld [vmem:[%s193 + $0x1d0] sm:$0xff]
        %v274 = vld [vmem:[%s193 + $0x1d8] sm:$0xff]
        %v275 = vld [vmem:[%s193 + $0x1e0] sm:$0xff]
        %v276 = vld [vmem:[%s193 + $0x1e8] sm:$0xff]
        %v277 = vld [vmem:[%s193 + $0x1f0] sm:$0xff]
        %v278 = vld [vmem:[%s193 + $0x1f8] sm:$0xff]
        %v279 = vld [vmem:[%s1] sm:$0xff]
        %v280 = vld [vmem:[%s1 + $0x8] sm:$0xff]
        %v281 = vld [vmem:[%s1 + $0x10] sm:$0xff]
        %v282 = vld [vmem:[%s1 + $0x18] sm:$0xff]
        %v283 = vld [vmem:[%s1 + $0x20] sm:$0xf]
        %vm284 = vcmask 293888
        %v286 = vsel %vm284, %v215, 0
        %v289 = vsel %vm284, %v216, 0
        %v292 = vsel %vm284, %v217, 0
        %v295 = vsel %vm284, %v218, 0
        %v298 = vsel %vm284, %v219, 0
        %v301 = vsel %vm284, %v220, 0
        %v304 = vsel %vm284, %v221, 0
        %v307 = vsel %vm284, %v222, 0
        %v310 = vsel %vm284, %v223, 0
        %v313 = vsel %vm284, %v224, 0
        %v316 = vsel %vm284, %v225, 0
        %v319 = vsel %vm284, %v226, 0
        %v322 = vsel %vm284, %v227, 0
        %v325 = vsel %vm284, %v228, 0
        %v328 = vsel %vm284, %v229, 0
        %v331 = vsel %vm284, %v230, 0
        %v334 = vsel %vm284, %v231, 0
        %v337 = vsel %vm284, %v232, 0
        %v340 = vsel %vm284, %v233, 0
        %v343 = vsel %vm284, %v234, 0
        %v346 = vsel %vm284, %v235, 0
        %v349 = vsel %vm284, %v236, 0
        %v352 = vsel %vm284, %v237, 0
        %v355 = vsel %vm284, %v238, 0
        %v358 = vsel %vm284, %v239, 0
        %v361 = vsel %vm284, %v240, 0
        %v364 = vsel %vm284, %v241, 0
        %v367 = vsel %vm284, %v242, 0
        %v370 = vsel %vm284, %v243, 0
        %v373 = vsel %vm284, %v244, 0
        %v376 = vsel %vm284, %v245, 0
        %v379 = vsel %vm284, %v246, 0
        %v382 = vsel %vm284, %v247, 0
        %v385 = vsel %vm284, %v248, 0
        %v388 = vsel %vm284, %v249, 0
        %v391 = vsel %vm284, %v250, 0
        %v394 = vsel %vm284, %v251, 0
        %v397 = vsel %vm284, %v252, 0
        %v400 = vsel %vm284, %v253, 0
        %v403 = vsel %vm284, %v254, 0
        %v406 = vsel %vm284, %v255, 0
        %v409 = vsel %vm284, %v256, 0
        %v412 = vsel %vm284, %v257, 0
        %v415 = vsel %vm284, %v258, 0
        %v418 = vsel %vm284, %v259, 0
        %v421 = vsel %vm284, %v260, 0
        %v424 = vsel %vm284, %v261, 0
        %v427 = vsel %vm284, %v262, 0
        %v430 = vsel %vm284, %v263, 0
        %v433 = vsel %vm284, %v264, 0
        %v436 = vsel %vm284, %v265, 0
        %v439 = vsel %vm284, %v266, 0
        %v442 = vsel %vm284, %v267, 0
        %v445 = vsel %vm284, %v268, 0
        %v448 = vsel %vm284, %v269, 0
        %v451 = vsel %vm284, %v270, 0
        %v454 = vsel %vm284, %v271, 0
        %v457 = vsel %vm284, %v272, 0
        %v460 = vsel %vm284, %v273, 0
        %v463 = vsel %vm284, %v274, 0
        %v466 = vsel %vm284, %v275, 0
        %v469 = vsel %vm284, %v276, 0
        %v472 = vsel %vm284, %v277, 0
        %v475 = vsel %vm284, %v278, 0
        %vm477 = vcmask 1043456
        %v479 = vsel %vm477, %v283, 0
        %481 = vmatprep.subr.mxu0 0.0
        %482 = vmatpush1.msra.mxu0 0.0
        %483 = vmatprep.subr.mxu0 0.0
        %484 = vmatpush1.msra.mxu0 0.0
        %485 = vmatprep.subr.mxu0 0.0
        %486 = vmatpush1.msra.mxu0 0.0
        %487 = vmatprep.subr.mxu0 0.0
        %488 = vmatpush1.msra.mxu0 0.0
        %489 = vmatprep.subr.mxu0 0.0
        %490 = vmatpush1.msra.mxu0 0.0
        %491 = vmatprep.subr.mxu0 0.0
        %492 = vmatpush1.msra.mxu0 0.0
        %493 = vmatprep.subr.mxu0 0.0
        %494 = vmatpush1.msra.mxu0 0.0
        %495 = vmatprep.subr.mxu0 0.0
        %496 = vmatpush1.msra.mxu0 0.0
        %497 = vmatprep.subr.mxu0 0.0
        %498 = vmatpush1.msra.mxu0 0.0
        %499 = vmatprep.subr.mxu0 0.0
        %500 = vmatpush1.msra.mxu0 0.0
        %501 = vmatprep.subr.mxu0 0.0
        %502 = vmatpush1.msra.mxu0 0.0
        %503 = vmatprep.subr.mxu0 0.0
        %504 = vmatpush1.msra.mxu0 %v479
        %505 = vmatprep.subr.mxu0 0.0
        %506 = vmatpush1.msra.mxu0 %v282
        %507 = vmatprep.subr.mxu0 0.0
        %508 = vmatpush1.msra.mxu0 %v281
        %509 = vmatprep.subr.mxu0 0.0
        %510 = vmatpush1.msra.mxu0 %v280
        %511 = vmatprep.subr.mxu0 0.0
        %512 = vmatpush1.msra.mxu0 %v279
        %513 = vmatprep.subr.mxu0 0.0
        %514 = vmatpush2.msra.mxu0 0.0
        %515 = vmatprep.subr.mxu0 0.0
        %516 = vmatpush2.msra.mxu0 0.0
        %517 = vmatprep.subr.mxu0 0.0
        %518 = vmatpush2.msra.mxu0 0.0
        %519 = vmatprep.subr.mxu0 0.0
        %520 = vmatpush2.msra.mxu0 0.0
        %521 = vmatprep.subr.mxu0 0.0
        %522 = vmatpush2.msra.mxu0 0.0
        %523 = vmatprep.subr.mxu0 0.0
        %524 = vmatpush2.msra.mxu0 0.0
        %525 = vmatprep.subr.mxu0 0.0
        %526 = vmatpush2.msra.mxu0 0.0
        %527 = vmatprep.subr.mxu0 0.0
        %528 = vmatpush2.msra.mxu0 0.0
        %529 = vmatprep.subr.mxu0 0.0
        %530 = vmatpush2.msra.mxu0 0.0
        %531 = vmatprep.subr.mxu0 0.0
        %532 = vmatpush2.msra.mxu0 0.0
        %533 = vmatprep.subr.mxu0 0.0
        %534 = vmatpush2.msra.mxu0 0.0
        %535 = vmatprep.subr.mxu0 0.0
        %536 = vmatpush2.msra.mxu0 0.0
        %537 = vmatprep.subr.mxu0 0.0
        %538 = vmatpush2.msra.mxu0 0.0
        %539 = vmatprep.subr.mxu0 0.0
        %540 = vmatpush2.msra.mxu0 0.0
        %541 = vmatprep.subr.mxu0 0.0
        %542 = vmatpush2.msra.mxu0 0.0
        %543 = vmatprep.subr.mxu0 0.0
        %544 = vmatpush2.msra.mxu0 0.0
        %545 = vmatprep.mubr.f32.mxu0 0.0
        %546 = vmatmul.mubr.f32.gmra.mxu0 %v286
        %v547 = vpop.f32.mrf.mxu0
        %v548 = vadd.f32 0.0, %v547
        %v549 = vpop.f32.mrf.mxu0
        %550 = vmatprep.mubr.f32.mxu0 0.0
        %551 = vmatmul.mubr.f32.gmra.mxu0 %v289
        %v552 = vpop.f32.mrf.mxu0
        %v553 = vadd.f32 0.0, %v552
        %v554 = vpop.f32.mrf.mxu0
        %555 = vmatprep.mubr.f32.mxu0 0.0
        %556 = vmatmul.mubr.f32.gmra.mxu0 %v292
        %v557 = vpop.f32.mrf.mxu0
        %v558 = vadd.f32 0.0, %v557
        %v559 = vpop.f32.mrf.mxu0
        %560 = vmatprep.mubr.f32.mxu0 0.0
        %561 = vmatmul.mubr.f32.gmra.mxu0 %v295
        %v562 = vpop.f32.mrf.mxu0
        %v563 = vadd.f32 0.0, %v562
        %v564 = vpop.f32.mrf.mxu0
        %565 = vmatprep.mubr.f32.mxu0 0.0
        %566 = vmatmul.mubr.f32.gmra.mxu0 %v298
        %v567 = vpop.f32.mrf.mxu0
        %v568 = vadd.f32 0.0, %v567
        %v569 = vpop.f32.mrf.mxu0
        %570 = vmatprep.mubr.f32.mxu0 0.0
        %571 = vmatmul.mubr.f32.gmra.mxu0 %v301
        %v572 = vpop.f32.mrf.mxu0
        %v573 = vadd.f32 0.0, %v572
        %v574 = vpop.f32.mrf.mxu0
        %575 = vmatprep.mubr.f32.mxu0 0.0
        %576 = vmatmul.mubr.f32.gmra.mxu0 %v304
        %v577 = vpop.f32.mrf.mxu0
        %v578 = vadd.f32 0.0, %v577
        %v579 = vpop.f32.mrf.mxu0
        %580 = vmatprep.mubr.f32.mxu0 0.0
        %581 = vmatmul.mubr.f32.gmra.mxu0 %v307
        %v582 = vpop.f32.mrf.mxu0
        %v583 = vadd.f32 0.0, %v582
        %v584 = vpop.f32.mrf.mxu0
        %585 = vmatprep.mubr.f32.mxu0 0.0
        %586 = vmatmul.mubr.f32.gmra.mxu0 %v310
        %v587 = vpop.f32.mrf.mxu0
        %v588 = vadd.f32 0.0, %v587
        %v589 = vpop.f32.mrf.mxu0
        %590 = vmatprep.mubr.f32.mxu0 0.0
        %591 = vmatmul.mubr.f32.gmra.mxu0 %v313
        %v592 = vpop.f32.mrf.mxu0
        %v593 = vadd.f32 0.0, %v592
        %v594 = vpop.f32.mrf.mxu0
        %595 = vmatprep.mubr.f32.mxu0 0.0
        %596 = vmatmul.mubr.f32.gmra.mxu0 %v316
        %v597 = vpop.f32.mrf.mxu0
        %v598 = vadd.f32 0.0, %v597
        %v599 = vpop.f32.mrf.mxu0
        %600 = vmatprep.mubr.f32.mxu0 0.0
        %601 = vmatmul.mubr.f32.gmra.mxu0 %v319
        %v602 = vpop.f32.mrf.mxu0
        %v603 = vadd.f32 0.0, %v602
        %v604 = vpop.f32.mrf.mxu0
        %605 = vmatprep.mubr.f32.mxu0 0.0
        %606 = vmatmul.mubr.f32.gmra.mxu0 %v322
        %v607 = vpop.f32.mrf.mxu0
        %v608 = vadd.f32 0.0, %v607
        %v609 = vpop.f32.mrf.mxu0
        %610 = vmatprep.mubr.f32.mxu0 0.0
        %611 = vmatmul.mubr.f32.gmra.mxu0 %v325
        %v612 = vpop.f32.mrf.mxu0
        %v613 = vadd.f32 0.0, %v612
        %v614 = vpop.f32.mrf.mxu0
        %615 = vmatprep.mubr.f32.mxu0 0.0
        %616 = vmatmul.mubr.f32.gmra.mxu0 %v328
        %v617 = vpop.f32.mrf.mxu0
        %v618 = vadd.f32 0.0, %v617
        %v619 = vpop.f32.mrf.mxu0
        %620 = vmatprep.mubr.f32.mxu0 0.0
        %621 = vmatmul.mubr.f32.gmra.mxu0 %v331
        %v622 = vpop.f32.mrf.mxu0
        %v623 = vadd.f32 0.0, %v622
        %v624 = vpop.f32.mrf.mxu0
        %625 = vmatprep.mubr.f32.mxu0 0.0
        %626 = vmatmul.mubr.f32.gmra.mxu0 %v334
        %v627 = vpop.f32.mrf.mxu0
        %v628 = vadd.f32 0.0, %v627
        %v629 = vpop.f32.mrf.mxu0
        %630 = vmatprep.mubr.f32.mxu0 0.0
        %631 = vmatmul.mubr.f32.gmra.mxu0 %v337
        %v632 = vpop.f32.mrf.mxu0
        %v633 = vadd.f32 0.0, %v632
        %v634 = vpop.f32.mrf.mxu0
        %635 = vmatprep.mubr.f32.mxu0 0.0
        %636 = vmatmul.mubr.f32.gmra.mxu0 %v340
        %v637 = vpop.f32.mrf.mxu0
        %v638 = vadd.f32 0.0, %v637
        %v639 = vpop.f32.mrf.mxu0
        %640 = vmatprep.mubr.f32.mxu0 0.0
        %641 = vmatmul.mubr.f32.gmra.mxu0 %v343
        %v642 = vpop.f32.mrf.mxu0
        %v643 = vadd.f32 0.0, %v642
        %v644 = vpop.f32.mrf.mxu0
        %645 = vmatprep.mubr.f32.mxu0 0.0
        %646 = vmatmul.mubr.f32.gmra.mxu0 %v346
        %v647 = vpop.f32.mrf.mxu0
        %v648 = vadd.f32 0.0, %v647
        %v649 = vpop.f32.mrf.mxu0
        %650 = vmatprep.mubr.f32.mxu0 0.0
        %651 = vmatmul.mubr.f32.gmra.mxu0 %v349
        %v652 = vpop.f32.mrf.mxu0
        %v653 = vadd.f32 0.0, %v652
        %v654 = vpop.f32.mrf.mxu0
        %655 = vmatprep.mubr.f32.mxu0 0.0
        %656 = vmatmul.mubr.f32.gmra.mxu0 %v352
        %v657 = vpop.f32.mrf.mxu0
        %v658 = vadd.f32 0.0, %v657
        %v659 = vpop.f32.mrf.mxu0
        %660 = vmatprep.mubr.f32.mxu0 0.0
        %661 = vmatmul.mubr.f32.gmra.mxu0 %v355
        %v662 = vpop.f32.mrf.mxu0
        %v663 = vadd.f32 0.0, %v662
        %v664 = vpop.f32.mrf.mxu0
        %665 = vmatprep.mubr.f32.mxu0 0.0
        %666 = vmatmul.mubr.f32.gmra.mxu0 %v358
        %v667 = vpop.f32.mrf.mxu0
        %v668 = vadd.f32 0.0, %v667
        %v669 = vpop.f32.mrf.mxu0
        %670 = vmatprep.mubr.f32.mxu0 0.0
        %671 = vmatmul.mubr.f32.gmra.mxu0 %v361
        %v672 = vpop.f32.mrf.mxu0
        %v673 = vadd.f32 0.0, %v672
        %v674 = vpop.f32.mrf.mxu0
        %675 = vmatprep.mubr.f32.mxu0 0.0
        %676 = vmatmul.mubr.f32.gmra.mxu0 %v364
        %v677 = vpop.f32.mrf.mxu0
        %v678 = vadd.f32 0.0, %v677
        %v679 = vpop.f32.mrf.mxu0
        %680 = vmatprep.mubr.f32.mxu0 0.0
        %681 = vmatmul.mubr.f32.gmra.mxu0 %v367
        %v682 = vpop.f32.mrf.mxu0
        %v683 = vadd.f32 0.0, %v682
        %v684 = vpop.f32.mrf.mxu0
        %685 = vmatprep.mubr.f32.mxu0 0.0
        %686 = vmatmul.mubr.f32.gmra.mxu0 %v370
        %v687 = vpop.f32.mrf.mxu0
        %v688 = vadd.f32 0.0, %v687
        %v689 = vpop.f32.mrf.mxu0
        %690 = vmatprep.mubr.f32.mxu0 0.0
        %691 = vmatmul.mubr.f32.gmra.mxu0 %v373
        %v692 = vpop.f32.mrf.mxu0
        %v693 = vadd.f32 0.0, %v692
        %v694 = vpop.f32.mrf.mxu0
        %695 = vmatprep.mubr.f32.mxu0 0.0
        %696 = vmatmul.mubr.f32.gmra.mxu0 %v376
        %v697 = vpop.f32.mrf.mxu0
        %v698 = vadd.f32 0.0, %v697
        %v699 = vpop.f32.mrf.mxu0
        %700 = vmatprep.mubr.f32.mxu0 0.0
        %701 = vmatmul.mubr.f32.gmra.mxu0 %v379
        %v702 = vpop.f32.mrf.mxu0
        %v703 = vadd.f32 0.0, %v702
        %v704 = vpop.f32.mrf.mxu0
        %705 = vmatprep.mubr.f32.mxu0 0.0
        %706 = vmatmul.mubr.f32.gmra.mxu0 %v382
        %v707 = vpop.f32.mrf.mxu0
        %v708 = vadd.f32 0.0, %v707
        %v709 = vpop.f32.mrf.mxu0
        %710 = vmatprep.mubr.f32.mxu0 0.0
        %711 = vmatmul.mubr.f32.gmra.mxu0 %v385
        %v712 = vpop.f32.mrf.mxu0
        %v713 = vadd.f32 0.0, %v712
        %v714 = vpop.f32.mrf.mxu0
        %715 = vmatprep.mubr.f32.mxu0 0.0
        %716 = vmatmul.mubr.f32.gmra.mxu0 %v388
        %v717 = vpop.f32.mrf.mxu0
        %v718 = vadd.f32 0.0, %v717
        %v719 = vpop.f32.mrf.mxu0
        %720 = vmatprep.mubr.f32.mxu0 0.0
        %721 = vmatmul.mubr.f32.gmra.mxu0 %v391
        %v722 = vpop.f32.mrf.mxu0
        %v723 = vadd.f32 0.0, %v722
        %v724 = vpop.f32.mrf.mxu0
        %725 = vmatprep.mubr.f32.mxu0 0.0
        %726 = vmatmul.mubr.f32.gmra.mxu0 %v394
        %v727 = vpop.f32.mrf.mxu0
        %v728 = vadd.f32 0.0, %v727
        %v729 = vpop.f32.mrf.mxu0
        %730 = vmatprep.mubr.f32.mxu0 0.0
        %731 = vmatmul.mubr.f32.gmra.mxu0 %v397
        %v732 = vpop.f32.mrf.mxu0
        %v733 = vadd.f32 0.0, %v732
        %v734 = vpop.f32.mrf.mxu0
        %735 = vmatprep.mubr.f32.mxu0 0.0
        %736 = vmatmul.mubr.f32.gmra.mxu0 %v400
        %v737 = vpop.f32.mrf.mxu0
        %v738 = vadd.f32 0.0, %v737
        %v739 = vpop.f32.mrf.mxu0
        %740 = vmatprep.mubr.f32.mxu0 0.0
        %741 = vmatmul.mubr.f32.gmra.mxu0 %v403
        %v742 = vpop.f32.mrf.mxu0
        %v743 = vadd.f32 0.0, %v742
        %v744 = vpop.f32.mrf.mxu0
        %745 = vmatprep.mubr.f32.mxu0 0.0
        %746 = vmatmul.mubr.f32.gmra.mxu0 %v406
        %v747 = vpop.f32.mrf.mxu0
        %v748 = vadd.f32 0.0, %v747
        %v749 = vpop.f32.mrf.mxu0
        %750 = vmatprep.mubr.f32.mxu0 0.0
        %751 = vmatmul.mubr.f32.gmra.mxu0 %v409
        %v752 = vpop.f32.mrf.mxu0
        %v753 = vadd.f32 0.0, %v752
        %v754 = vpop.f32.mrf.mxu0
        %755 = vmatprep.mubr.f32.mxu0 0.0
        %756 = vmatmul.mubr.f32.gmra.mxu0 %v412
        %v757 = vpop.f32.mrf.mxu0
        %v758 = vadd.f32 0.0, %v757
        %v759 = vpop.f32.mrf.mxu0
        %760 = vmatprep.mubr.f32.mxu0 0.0
        %761 = vmatmul.mubr.f32.gmra.mxu0 %v415
        %v762 = vpop.f32.mrf.mxu0
        %v763 = vadd.f32 0.0, %v762
        %v764 = vpop.f32.mrf.mxu0
        %765 = vmatprep.mubr.f32.mxu0 0.0
        %766 = vmatmul.mubr.f32.gmra.mxu0 %v418
        %v767 = vpop.f32.mrf.mxu0
        %v768 = vadd.f32 0.0, %v767
        %v769 = vpop.f32.mrf.mxu0
        %770 = vmatprep.mubr.f32.mxu0 0.0
        %771 = vmatmul.mubr.f32.gmra.mxu0 %v421
        %v772 = vpop.f32.mrf.mxu0
        %v773 = vadd.f32 0.0, %v772
        %v774 = vpop.f32.mrf.mxu0
        %775 = vmatprep.mubr.f32.mxu0 0.0
        %776 = vmatmul.mubr.f32.gmra.mxu0 %v424
        %v777 = vpop.f32.mrf.mxu0
        %v778 = vadd.f32 0.0, %v777
        %v779 = vpop.f32.mrf.mxu0
        %780 = vmatprep.mubr.f32.mxu0 0.0
        %781 = vmatmul.mubr.f32.gmra.mxu0 %v427
        %v782 = vpop.f32.mrf.mxu0
        %v783 = vadd.f32 0.0, %v782
        %v784 = vpop.f32.mrf.mxu0
        %785 = vmatprep.mubr.f32.mxu0 0.0
        %786 = vmatmul.mubr.f32.gmra.mxu0 %v430
        %v787 = vpop.f32.mrf.mxu0
        %v788 = vadd.f32 0.0, %v787
        %v789 = vpop.f32.mrf.mxu0
        %790 = vmatprep.mubr.f32.mxu0 0.0
        %791 = vmatmul.mubr.f32.gmra.mxu0 %v433
        %v792 = vpop.f32.mrf.mxu0
        %v793 = vadd.f32 0.0, %v792
        %v794 = vpop.f32.mrf.mxu0
        %795 = vmatprep.mubr.f32.mxu0 0.0
        %796 = vmatmul.mubr.f32.gmra.mxu0 %v436
        %v797 = vpop.f32.mrf.mxu0
        %v798 = vadd.f32 0.0, %v797
        %v799 = vpop.f32.mrf.mxu0
        %800 = vmatprep.mubr.f32.mxu0 0.0
        %801 = vmatmul.mubr.f32.gmra.mxu0 %v439
        %v802 = vpop.f32.mrf.mxu0
        %v803 = vadd.f32 0.0, %v802
        %v804 = vpop.f32.mrf.mxu0
        %805 = vmatprep.mubr.f32.mxu0 0.0
        %806 = vmatmul.mubr.f32.gmra.mxu0 %v442
        %v807 = vpop.f32.mrf.mxu0
        %v808 = vadd.f32 0.0, %v807
        %v809 = vpop.f32.mrf.mxu0
        %810 = vmatprep.mubr.f32.mxu0 0.0
        %811 = vmatmul.mubr.f32.gmra.mxu0 %v445
        %v812 = vpop.f32.mrf.mxu0
        %v813 = vadd.f32 0.0, %v812
        %v814 = vpop.f32.mrf.mxu0
        %815 = vmatprep.mubr.f32.mxu0 0.0
        %816 = vmatmul.mubr.f32.gmra.mxu0 %v448
        %v817 = vpop.f32.mrf.mxu0
        %v818 = vadd.f32 0.0, %v817
        %v819 = vpop.f32.mrf.mxu0
        %820 = vmatprep.mubr.f32.mxu0 0.0
        %821 = vmatmul.mubr.f32.gmra.mxu0 %v451
        %v822 = vpop.f32.mrf.mxu0
        %v823 = vadd.f32 0.0, %v822
        %v824 = vpop.f32.mrf.mxu0
        %825 = vmatprep.mubr.f32.mxu0 0.0
        %826 = vmatmul.mubr.f32.gmra.mxu0 %v454
        %v827 = vpop.f32.mrf.mxu0
        %v828 = vadd.f32 0.0, %v827
        %v829 = vpop.f32.mrf.mxu0
        %830 = vmatprep.mubr.f32.mxu0 0.0
        %831 = vmatmul.mubr.f32.gmra.mxu0 %v457
        %v832 = vpop.f32.mrf.mxu0
        %v833 = vadd.f32 0.0, %v832
        %v834 = vpop.f32.mrf.mxu0
        %835 = vmatprep.mubr.f32.mxu0 0.0
        %836 = vmatmul.mubr.f32.gmra.mxu0 %v460
        %v837 = vpop.f32.mrf.mxu0
        %v838 = vadd.f32 0.0, %v837
        %v839 = vpop.f32.mrf.mxu0
        %840 = vmatprep.mubr.f32.mxu0 0.0
        %841 = vmatmul.mubr.f32.gmra.mxu0 %v463
        %v842 = vpop.f32.mrf.mxu0
        %v843 = vadd.f32 0.0, %v842
        %v844 = vpop.f32.mrf.mxu0
        %845 = vmatprep.mubr.f32.mxu0 0.0
        %846 = vmatmul.mubr.f32.gmra.mxu0 %v466
        %v847 = vpop.f32.mrf.mxu0
        %v848 = vadd.f32 0.0, %v847
        %v849 = vpop.f32.mrf.mxu0
        %850 = vmatprep.mubr.f32.mxu0 0.0
        %851 = vmatmul.mubr.f32.gmra.mxu0 %v469
        %v852 = vpop.f32.mrf.mxu0
        %v853 = vadd.f32 0.0, %v852
        %v854 = vpop.f32.mrf.mxu0
        %855 = vmatprep.mubr.f32.mxu0 0.0
        %856 = vmatmul.mubr.f32.gmra.mxu0 %v472
        %v857 = vpop.f32.mrf.mxu0
        %v858 = vadd.f32 0.0, %v857
        %v859 = vpop.f32.mrf.mxu0
        %860 = vmatprep.mubr.f32.mxu0 0.0
        %861 = vmatmul.mubr.f32.gmra.mxu0 %v475
        %v862 = vpop.f32.mrf.mxu0
        %v863 = vadd.f32 0.0, %v862
        %v864 = vpop.f32.mrf.mxu0
        %865 = vdwg.mxu0
        %s866 = scalar_lea.vmem [#allocation2], %s205
        %867 = vst [vmem:[%s866] sm:$0xff] %v548
        %868 = vst [vmem:[%s866 + $0x8] sm:$0xff] %v553
        %869 = vst [vmem:[%s866 + $0x10] sm:$0xff] %v558
        %870 = vst [vmem:[%s866 + $0x18] sm:$0xff] %v563
        %871 = vst [vmem:[%s866 + $0x20] sm:$0xff] %v568
        %872 = vst [vmem:[%s866 + $0x28] sm:$0xff] %v573
        %873 = vst [vmem:[%s866 + $0x30] sm:$0xff] %v578
        %874 = vst [vmem:[%s866 + $0x38] sm:$0xff] %v583
        %875 = vst [vmem:[%s866 + $0x40] sm:$0xff] %v588
        %876 = vst [vmem:[%s866 + $0x48] sm:$0xff] %v593
        %877 = vst [vmem:[%s866 + $0x50] sm:$0xff] %v598
        %878 = vst [vmem:[%s866 + $0x58] sm:$0xff] %v603
        %879 = vst [vmem:[%s866 + $0x60] sm:$0xff] %v608
        %880 = vst [vmem:[%s866 + $0x68] sm:$0xff] %v613
        %881 = vst [vmem:[%s866 + $0x70] sm:$0xff] %v618
        %882 = vst [vmem:[%s866 + $0x78] sm:$0xff] %v623
        %883 = vst [vmem:[%s866 + $0x80] sm:$0xff] %v628
        %884 = vst [vmem:[%s866 + $0x88] sm:$0xff] %v633
        %885 = vst [vmem:[%s866 + $0x90] sm:$0xff] %v638
        %886 = vst [vmem:[%s866 + $0x98] sm:$0xff] %v643
        %887 = vst [vmem:[%s866 + $0xa0] sm:$0xff] %v648
        %888 = vst [vmem:[%s866 + $0xa8] sm:$0xff] %v653
        %889 = vst [vmem:[%s866 + $0xb0] sm:$0xff] %v658
        %890 = vst [vmem:[%s866 + $0xb8] sm:$0xff] %v663
        %891 = vst [vmem:[%s866 + $0xc0] sm:$0xff] %v668
        %892 = vst [vmem:[%s866 + $0xc8] sm:$0xff] %v673
        %893 = vst [vmem:[%s866 + $0xd0] sm:$0xff] %v678
        %894 = vst [vmem:[%s866 + $0xd8] sm:$0xff] %v683
        %895 = vst [vmem:[%s866 + $0xe0] sm:$0xff] %v688
        %896 = vst [vmem:[%s866 + $0xe8] sm:$0xff] %v693
        %897 = vst [vmem:[%s866 + $0xf0] sm:$0xff] %v698
        %898 = vst [vmem:[%s866 + $0xf8] sm:$0xff] %v703
        %899 = vst [vmem:[%s866 + $0x100] sm:$0xff] %v708
        %900 = vst [vmem:[%s866 + $0x108] sm:$0xff] %v713
        %901 = vst [vmem:[%s866 + $0x110] sm:$0xff] %v718
        %902 = vst [vmem:[%s866 + $0x118] sm:$0xff] %v723
        %903 = vst [vmem:[%s866 + $0x120] sm:$0xff] %v728
        %904 = vst [vmem:[%s866 + $0x128] sm:$0xff] %v733
        %905 = vst [vmem:[%s866 + $0x130] sm:$0xff] %v738
        %906 = vst [vmem:[%s866 + $0x138] sm:$0xff] %v743
        %907 = vst [vmem:[%s866 + $0x140] sm:$0xff] %v748
        %908 = vst [vmem:[%s866 + $0x148] sm:$0xff] %v753
        %909 = vst [vmem:[%s866 + $0x150] sm:$0xff] %v758
        %910 = vst [vmem:[%s866 + $0x158] sm:$0xff] %v763
        %911 = vst [vmem:[%s866 + $0x160] sm:$0xff] %v768
        %912 = vst [vmem:[%s866 + $0x168] sm:$0xff] %v773
        %913 = vst [vmem:[%s866 + $0x170] sm:$0xff] %v778
        %914 = vst [vmem:[%s866 + $0x178] sm:$0xff] %v783
        %915 = vst [vmem:[%s866 + $0x180] sm:$0xff] %v788
        %916 = vst [vmem:[%s866 + $0x188] sm:$0xff] %v793
        %917 = vst [vmem:[%s866 + $0x190] sm:$0xff] %v798
        %918 = vst [vmem:[%s866 + $0x198] sm:$0xff] %v803
        %919 = vst [vmem:[%s866 + $0x1a0] sm:$0xff] %v808
        %920 = vst [vmem:[%s866 + $0x1a8] sm:$0xff] %v813
        %921 = vst [vmem:[%s866 + $0x1b0] sm:$0xff] %v818
        %922 = vst [vmem:[%s866 + $0x1b8] sm:$0xff] %v823
        %923 = vst [vmem:[%s866 + $0x1c0] sm:$0xff] %v828
        %924 = vst [vmem:[%s866 + $0x1c8] sm:$0xff] %v833
        %925 = vst [vmem:[%s866 + $0x1d0] sm:$0xff] %v838
        %926 = vst [vmem:[%s866 + $0x1d8] sm:$0xff] %v843
        %927 = vst [vmem:[%s866 + $0x1e0] sm:$0xff] %v848
        %928 = vst [vmem:[%s866 + $0x1e8] sm:$0xff] %v853
        %929 = vst [vmem:[%s866 + $0x1f0] sm:$0xff] %v858
        %930 = vst [vmem:[%s866 + $0x1f8] sm:$0xff] %v863
        %v931 = vld [vmem:[#allocation3] sm:$0x1]
        %v932 = vadd.f32 %v548, %v553
        %v933 = vadd.f32 %v932, %v558
        %v934 = vadd.f32 %v933, %v563
        %v935 = vadd.f32 %v934, %v568
        %v936 = vadd.f32 %v935, %v573
        %v937 = vadd.f32 %v936, %v578
        %v938 = vadd.f32 %v937, %v583
        %v939 = vadd.f32 %v938, %v588
        %v940 = vadd.f32 %v939, %v593
        %v941 = vadd.f32 %v940, %v598
        %v942 = vadd.f32 %v941, %v603
        %v943 = vadd.f32 %v942, %v608
        %v944 = vadd.f32 %v943, %v613
        %v945 = vadd.f32 %v944, %v618
        %v946 = vadd.f32 %v945, %v623
        %v947 = vadd.f32 %v946, %v628
        %v948 = vadd.f32 %v947, %v633
        %v949 = vadd.f32 %v948, %v638
        %v950 = vadd.f32 %v949, %v643
        %v951 = vadd.f32 %v950, %v648
        %v952 = vadd.f32 %v951, %v653
        %v953 = vadd.f32 %v952, %v658
        %v954 = vadd.f32 %v953, %v663
        %v955 = vadd.f32 %v954, %v668
        %v956 = vadd.f32 %v955, %v673
        %v957 = vadd.f32 %v956, %v678
        %v958 = vadd.f32 %v957, %v683
        %v959 = vadd.f32 %v958, %v688
        %v960 = vadd.f32 %v959, %v693
        %v961 = vadd.f32 %v960, %v698
        %v962 = vadd.f32 %v961, %v703
        %v963 = vadd.f32 %v962, %v708
        %v964 = vadd.f32 %v963, %v713
        %v965 = vadd.f32 %v964, %v718
        %v966 = vadd.f32 %v965, %v723
        %v967 = vadd.f32 %v966, %v728
        %v968 = vadd.f32 %v967, %v733
        %v969 = vadd.f32 %v968, %v738
        %v970 = vadd.f32 %v969, %v743
        %v971 = vadd.f32 %v970, %v748
        %v972 = vadd.f32 %v971, %v753
        %v973 = vadd.f32 %v972, %v758
        %v974 = vadd.f32 %v973, %v763
        %v975 = vadd.f32 %v974, %v768
        %v976 = vadd.f32 %v975, %v773
        %v977 = vadd.f32 %v976, %v778
        %v978 = vadd.f32 %v977, %v783
        %v979 = vadd.f32 %v978, %v788
        %v980 = vadd.f32 %v979, %v793
        %v981 = vadd.f32 %v980, %v798
        %v982 = vadd.f32 %v981, %v803
        %v983 = vadd.f32 %v982, %v808
        %v984 = vadd.f32 %v983, %v813
        %v985 = vadd.f32 %v984, %v818
        %v986 = vadd.f32 %v985, %v823
        %v987 = vadd.f32 %v986, %v828
        %v988 = vadd.f32 %v987, %v833
        %v989 = vadd.f32 %v988, %v838
        %v990 = vadd.f32 %v989, %v843
        %v991 = vadd.f32 %v990, %v848
        %v992 = vadd.f32 %v991, %v853
        %v993 = vadd.f32 %v992, %v858
        %v994 = vadd.f32 %v993, %v863
        %v995 = vrot.slane %v994, 4
        %v996 = vadd.f32 %v994, %v995
        %v997 = vrot.slane %v996, 2
        %v998 = vadd.f32 %v996, %v997
        %v999 = vrot.slane %v998, 1
        %v1000 = vadd.f32 %v998, %v999
        %v1001 = vadd.f32 %v931, %v1000
        %1002 = vst [vmem:[#allocation3] sm:$0x1] %v1001
        // Predicated region
        $region41: #{conv_bn_relu.1} parent=35 // pred_check
          %p1003 = pneg %p210
        $region42: #{conv_bn_relu.1} parent=35 // pred_check_branch
          %1005 = sbr.rel (%p1003) target = $region44
        $region43: #{conv_bn_relu.1} parent=35 // pred_region
          %v1006 = vld [vmem:[#allocation3] sm:$0x1]
          %v1007 = vmul.f32 %v1006, 0.001953125
          %v1008 = vld [vmem:[#allocation2] sm:$0xff]
          %v1009 = vld [vmem:[#allocation2 + $0x8] sm:$0xff]
          %v1010 = vld [vmem:[#allocation2 + $0x10] sm:$0xff]
          %v1011 = vld [vmem:[#allocation2 + $0x18] sm:$0xff]
          %v1012 = vld [vmem:[#allocation2 + $0x20] sm:$0xff]
          %v1013 = vld [vmem:[#allocation2 + $0x28] sm:$0xff]
          %v1014 = vld [vmem:[#allocation2 + $0x30] sm:$0xff]
          %v1015 = vld [vmem:[#allocation2 + $0x38] sm:$0xff]
          %v1016 = vld [vmem:[#allocation2 + $0x40] sm:$0xff]
          %v1017 = vld [vmem:[#allocation2 + $0x48] sm:$0xff]
          %v1018 = vld [vmem:[#allocation2 + $0x50] sm:$0xff]
          %v1019 = vld [vmem:[#allocation2 + $0x58] sm:$0xff]
          %v1020 = vld [vmem:[#allocation2 + $0x60] sm:$0xff]
          %v1021 = vld [vmem:[#allocation2 + $0x68] sm:$0xff]
          %v1022 = vld [vmem:[#allocation2 + $0x70] sm:$0xff]
          %v1023 = vld [vmem:[#allocation2 + $0x78] sm:$0xff]
          %v1024 = vld [vmem:[#allocation2 + $0x80] sm:$0xff]
          %v1025 = vld [vmem:[#allocation2 + $0x88] sm:$0xff]
          %v1026 = vld [vmem:[#allocation2 + $0x90] sm:$0xff]
          %v1027 = vld [vmem:[#allocation2 + $0x98] sm:$0xff]
          %v1028 = vld [vmem:[#allocation2 + $0xa0] sm:$0xff]
          %v1029 = vld [vmem:[#allocation2 + $0xa8] sm:$0xff]
          %v1030 = vld [vmem:[#allocation2 + $0xb0] sm:$0xff]
          %v1031 = vld [vmem:[#allocation2 + $0xb8] sm:$0xff]
          %v1032 = vld [vmem:[#allocation2 + $0xc0] sm:$0xff]
          %v1033 = vld [vmem:[#allocation2 + $0xc8] sm:$0xff]
          %v1034 = vld [vmem:[#allocation2 + $0xd0] sm:$0xff]
          %v1035 = vld [vmem:[#allocation2 + $0xd8] sm:$0xff]
          %v1036 = vld [vmem:[#allocation2 + $0xe0] sm:$0xff]
          %v1037 = vld [vmem:[#allocation2 + $0xe8] sm:$0xff]
          %v1038 = vld [vmem:[#allocation2 + $0xf0] sm:$0xff]
          %v1039 = vld [vmem:[#allocation2 + $0xf8] sm:$0xff]
          %v1040 = vld [vmem:[#allocation2 + $0x100] sm:$0xff]
          %v1041 = vld [vmem:[#allocation2 + $0x108] sm:$0xff]
          %v1042 = vld [vmem:[#allocation2 + $0x110] sm:$0xff]
          %v1043 = vld [vmem:[#allocation2 + $0x118] sm:$0xff]
          %v1044 = vld [vmem:[#allocation2 + $0x120] sm:$0xff]
          %v1045 = vld [vmem:[#allocation2 + $0x128] sm:$0xff]
          %v1046 = vld [vmem:[#allocation2 + $0x130] sm:$0xff]
          %v1047 = vld [vmem:[#allocation2 + $0x138] sm:$0xff]
          %v1048 = vld [vmem:[#allocation2 + $0x140] sm:$0xff]
          %v1049 = vld [vmem:[#allocation2 + $0x148] sm:$0xff]
          %v1050 = vld [vmem:[#allocation2 + $0x150] sm:$0xff]
          %v1051 = vld [vmem:[#allocation2 + $0x158] sm:$0xff]
          %v1052 = vld [vmem:[#allocation2 + $0x160] sm:$0xff]
          %v1053 = vld [vmem:[#allocation2 + $0x168] sm:$0xff]
          %v1054 = vld [vmem:[#allocation2 + $0x170] sm:$0xff]
          %v1055 = vld [vmem:[#allocation2 + $0x178] sm:$0xff]
          %v1056 = vld [vmem:[#allocation2 + $0x180] sm:$0xff]
          %v1057 = vld [vmem:[#allocation2 + $0x188] sm:$0xff]
          %v1058 = vld [vmem:[#allocation2 + $0x190] sm:$0xff]
          %v1059 = vld [vmem:[#allocation2 + $0x198] sm:$0xff]
          %v1060 = vld [vmem:[#allocation2 + $0x1a0] sm:$0xff]
          %v1061 = vld [vmem:[#allocation2 + $0x1a8] sm:$0xff]
          %v1062 = vld [vmem:[#allocation2 + $0x1b0] sm:$0xff]
          %v1063 = vld [vmem:[#allocation2 + $0x1b8] sm:$0xff]
          %v1064 = vld [vmem:[#allocation2 + $0x1c0] sm:$0xff]
          %v1065 = vld [vmem:[#allocation2 + $0x1c8] sm:$0xff]
          %v1066 = vld [vmem:[#allocation2 + $0x1d0] sm:$0xff]
          %v1067 = vld [vmem:[#allocation2 + $0x1d8] sm:$0xff]
          %v1068 = vld [vmem:[#allocation2 + $0x1e0] sm:$0xff]
          %v1069 = vld [vmem:[#allocation2 + $0x1e8] sm:$0xff]
          %v1070 = vld [vmem:[#allocation2 + $0x1f0] sm:$0xff]
          %v1071 = vld [vmem:[#allocation2 + $0x1f8] sm:$0xff]
          %v1073 = vlaneseq
          %v1074 = vshrl.u32 %v1073, 7
          %v1075 = vsub.s32 0, %v1074
          %v1076 = vrot.slane %v1007, %v1075
          %v1078 = vsub.f32 %v1008, %v1076
          %v1079 = vsub.f32 %v1009, %v1076
          %v1080 = vsub.f32 %v1010, %v1076
          %v1081 = vsub.f32 %v1011, %v1076
          %v1082 = vsub.f32 %v1012, %v1076
          %v1083 = vsub.f32 %v1013, %v1076
          %v1084 = vsub.f32 %v1014, %v1076
          %v1085 = vsub.f32 %v1015, %v1076
          %v1086 = vsub.f32 %v1016, %v1076
          %v1087 = vsub.f32 %v1017, %v1076
          %v1088 = vsub.f32 %v1018, %v1076
          %v1089 = vsub.f32 %v1019, %v1076
          %v1090 = vsub.f32 %v1020, %v1076
          %v1091 = vsub.f32 %v1021, %v1076
          %v1092 = vsub.f32 %v1022, %v1076
          %v1093 = vsub.f32 %v1023, %v1076
          %v1094 = vsub.f32 %v1024, %v1076
          %v1095 = vsub.f32 %v1025, %v1076
          %v1096 = vsub.f32 %v1026, %v1076
          %v1097 = vsub.f32 %v1027, %v1076
          %v1098 = vsub.f32 %v1028, %v1076
          %v1099 = vsub.f32 %v1029, %v1076
          %v1100 = vsub.f32 %v1030, %v1076
          %v1101 = vsub.f32 %v1031, %v1076
          %v1102 = vsub.f32 %v1032, %v1076
          %v1103 = vsub.f32 %v1033, %v1076
          %v1104 = vsub.f32 %v1034, %v1076
          %v1105 = vsub.f32 %v1035, %v1076
          %v1106 = vsub.f32 %v1036, %v1076
          %v1107 = vsub.f32 %v1037, %v1076
          %v1108 = vsub.f32 %v1038, %v1076
          %v1109 = vsub.f32 %v1039, %v1076
          %v1110 = vsub.f32 %v1040, %v1076
          %v1111 = vsub.f32 %v1041, %v1076
          %v1112 = vsub.f32 %v1042, %v1076
          %v1113 = vsub.f32 %v1043, %v1076
          %v1114 = vsub.f32 %v1044, %v1076
          %v1115 = vsub.f32 %v1045, %v1076
          %v1116 = vsub.f32 %v1046, %v1076
          %v1117 = vsub.f32 %v1047, %v1076
          %v1118 = vsub.f32 %v1048, %v1076
          %v1119 = vsub.f32 %v1049, %v1076
          %v1120 = vsub.f32 %v1050, %v1076
          %v1121 = vsub.f32 %v1051, %v1076
          %v1122 = vsub.f32 %v1052, %v1076
          %v1123 = vsub.f32 %v1053, %v1076
          %v1124 = vsub.f32 %v1054, %v1076
          %v1125 = vsub.f32 %v1055, %v1076
          %v1126 = vsub.f32 %v1056, %v1076
          %v1127 = vsub.f32 %v1057, %v1076
          %v1128 = vsub.f32 %v1058, %v1076
          %v1129 = vsub.f32 %v1059, %v1076
          %v1130 = vsub.f32 %v1060, %v1076
          %v1131 = vsub.f32 %v1061, %v1076
          %v1132 = vsub.f32 %v1062, %v1076
          %v1133 = vsub.f32 %v1063, %v1076
          %v1134 = vsub.f32 %v1064, %v1076
          %v1135 = vsub.f32 %v1065, %v1076
          %v1136 = vsub.f32 %v1066, %v1076
          %v1137 = vsub.f32 %v1067, %v1076
          %v1138 = vsub.f32 %v1068, %v1076
          %v1139 = vsub.f32 %v1069, %v1076
          %v1140 = vsub.f32 %v1070, %v1076
          %v1141 = vsub.f32 %v1071, %v1076
          %v1142 = vmul.f32 %v1078, %v1078
          %v1143 = vmul.f32 %v1079, %v1079
          %v1144 = vmul.f32 %v1080, %v1080
          %v1145 = vmul.f32 %v1081, %v1081
          %v1146 = vmul.f32 %v1082, %v1082
          %v1147 = vmul.f32 %v1083, %v1083
          %v1148 = vmul.f32 %v1084, %v1084
          %v1149 = vmul.f32 %v1085, %v1085
          %v1150 = vmul.f32 %v1086, %v1086
          %v1151 = vmul.f32 %v1087, %v1087
          %v1152 = vmul.f32 %v1088, %v1088
          %v1153 = vmul.f32 %v1089, %v1089
          %v1154 = vmul.f32 %v1090, %v1090
          %v1155 = vmul.f32 %v1091, %v1091
          %v1156 = vmul.f32 %v1092, %v1092
          %v1157 = vmul.f32 %v1093, %v1093
          %v1158 = vmul.f32 %v1094, %v1094
          %v1159 = vmul.f32 %v1095, %v1095
          %v1160 = vmul.f32 %v1096, %v1096
          %v1161 = vmul.f32 %v1097, %v1097
          %v1162 = vmul.f32 %v1098, %v1098
          %v1163 = vmul.f32 %v1099, %v1099
          %v1164 = vmul.f32 %v1100, %v1100
          %v1165 = vmul.f32 %v1101, %v1101
          %v1166 = vmul.f32 %v1102, %v1102
          %v1167 = vmul.f32 %v1103, %v1103
          %v1168 = vmul.f32 %v1104, %v1104
          %v1169 = vmul.f32 %v1105, %v1105
          %v1170 = vmul.f32 %v1106, %v1106
          %v1171 = vmul.f32 %v1107, %v1107
          %v1172 = vmul.f32 %v1108, %v1108
          %v1173 = vmul.f32 %v1109, %v1109
          %v1174 = vmul.f32 %v1110, %v1110
          %v1175 = vmul.f32 %v1111, %v1111
          %v1176 = vmul.f32 %v1112, %v1112
          %v1177 = vmul.f32 %v1113, %v1113
          %v1178 = vmul.f32 %v1114, %v1114
          %v1179 = vmul.f32 %v1115, %v1115
          %v1180 = vmul.f32 %v1116, %v1116
          %v1181 = vmul.f32 %v1117, %v1117
          %v1182 = vmul.f32 %v1118, %v1118
          %v1183 = vmul.f32 %v1119, %v1119
          %v1184 = vmul.f32 %v1120, %v1120
          %v1185 = vmul.f32 %v1121, %v1121
          %v1186 = vmul.f32 %v1122, %v1122
          %v1187 = vmul.f32 %v1123, %v1123
          %v1188 = vmul.f32 %v1124, %v1124
          %v1189 = vmul.f32 %v1125, %v1125
          %v1190 = vmul.f32 %v1126, %v1126
          %v1191 = vmul.f32 %v1127, %v1127
          %v1192 = vmul.f32 %v1128, %v1128
          %v1193 = vmul.f32 %v1129, %v1129
          %v1194 = vmul.f32 %v1130, %v1130
          %v1195 = vmul.f32 %v1131, %v1131
          %v1196 = vmul.f32 %v1132, %v1132
          %v1197 = vmul.f32 %v1133, %v1133
          %v1198 = vmul.f32 %v1134, %v1134
          %v1199 = vmul.f32 %v1135, %v1135
          %v1200 = vmul.f32 %v1136, %v1136
          %v1201 = vmul.f32 %v1137, %v1137
          %v1202 = vmul.f32 %v1138, %v1138
          %v1203 = vmul.f32 %v1139, %v1139
          %v1204 = vmul.f32 %v1140, %v1140
          %v1205 = vmul.f32 %v1141, %v1141
          %v1206 = vadd.f32 %v1142, %v1143
          %v1207 = vadd.f32 %v1206, %v1144
          %v1208 = vadd.f32 %v1207, %v1145
          %v1209 = vadd.f32 %v1208, %v1146
          %v1210 = vadd.f32 %v1209, %v1147
          %v1211 = vadd.f32 %v1210, %v1148
          %v1212 = vadd.f32 %v1211, %v1149
          %v1213 = vadd.f32 %v1212, %v1150
          %v1214 = vadd.f32 %v1213, %v1151
          %v1215 = vadd.f32 %v1214, %v1152
          %v1216 = vadd.f32 %v1215, %v1153
          %v1217 = vadd.f32 %v1216, %v1154
          %v1218 = vadd.f32 %v1217, %v1155
          %v1219 = vadd.f32 %v1218, %v1156
          %v1220 = vadd.f32 %v1219, %v1157
          %v1221 = vadd.f32 %v1220, %v1158
          %v1222 = vadd.f32 %v1221, %v1159
          %v1223 = vadd.f32 %v1222, %v1160
          %v1224 = vadd.f32 %v1223, %v1161
          %v1225 = vadd.f32 %v1224, %v1162
          %v1226 = vadd.f32 %v1225, %v1163
          %v1227 = vadd.f32 %v1226, %v1164
          %v1228 = vadd.f32 %v1227, %v1165
          %v1229 = vadd.f32 %v1228, %v1166
          %v1230 = vadd.f32 %v1229, %v1167
          %v1231 = vadd.f32 %v1230, %v1168
          %v1232 = vadd.f32 %v1231, %v1169
          %v1233 = vadd.f32 %v1232, %v1170
          %v1234 = vadd.f32 %v1233, %v1171
          %v1235 = vadd.f32 %v1234, %v1172
          %v1236 = vadd.f32 %v1235, %v1173
          %v1237 = vadd.f32 %v1236, %v1174
          %v1238 = vadd.f32 %v1237, %v1175
          %v1239 = vadd.f32 %v1238, %v1176
          %v1240 = vadd.f32 %v1239, %v1177
          %v1241 = vadd.f32 %v1240, %v1178
          %v1242 = vadd.f32 %v1241, %v1179
          %v1243 = vadd.f32 %v1242, %v1180
          %v1244 = vadd.f32 %v1243, %v1181
          %v1245 = vadd.f32 %v1244, %v1182
          %v1246 = vadd.f32 %v1245, %v1183
          %v1247 = vadd.f32 %v1246, %v1184
          %v1248 = vadd.f32 %v1247, %v1185
          %v1249 = vadd.f32 %v1248, %v1186
          %v1250 = vadd.f32 %v1249, %v1187
          %v1251 = vadd.f32 %v1250, %v1188
          %v1252 = vadd.f32 %v1251, %v1189
          %v1253 = vadd.f32 %v1252, %v1190
          %v1254 = vadd.f32 %v1253, %v1191
          %v1255 = vadd.f32 %v1254, %v1192
          %v1256 = vadd.f32 %v1255, %v1193
          %v1257 = vadd.f32 %v1256, %v1194
          %v1258 = vadd.f32 %v1257, %v1195
          %v1259 = vadd.f32 %v1258, %v1196
          %v1260 = vadd.f32 %v1259, %v1197
          %v1261 = vadd.f32 %v1260, %v1198
          %v1262 = vadd.f32 %v1261, %v1199
          %v1263 = vadd.f32 %v1262, %v1200
          %v1264 = vadd.f32 %v1263, %v1201
          %v1265 = vadd.f32 %v1264, %v1202
          %v1266 = vadd.f32 %v1265, %v1203
          %v1267 = vadd.f32 %v1266, %v1204
          %v1268 = vadd.f32 %v1267, %v1205
          %v1269 = vrot.slane %v1268, 4
          %v1270 = vadd.f32 %v1268, %v1269
          %v1271 = vrot.slane %v1270, 2
          %v1272 = vadd.f32 %v1270, %v1271
          %v1273 = vrot.slane %v1272, 1
          %v1274 = vadd.f32 %v1272, %v1273
          %v1275 = vmul.f32 %v1007, %v1007
          %v1276 = vmul.f32 %v1275, 0.0
          %v1277 = vsub.f32 %v1274, %v1276
          %v1278 = vmul.f32 %v1277, 0.001953125
          %v1279 = vmax.f32 %v1278, 0.0
          %v1280 = vld [vmem:[%s2] sm:$0x1]
          %v1281 = vadd.f32 %v1279, 1e-05
          %v1282 = vrsqrt.pop %v1281
          %v1283 = vmul.f32 %v1280, %v1282
          %1284 = vst [vmem:[#allocation4] sm:$0x1] %v1283
          %v1285 = vld [vmem:[%s2 + $0x1] sm:$0x1]
          %v1286 = vmul.f32 %v1007, %v1283
          %v1287 = vsub.f32 %v1285, %v1286
          %1288 = vst [vmem:[#allocation4 + $0x1] sm:$0x1] %v1287
        $region44: #{conv_bn_relu.1} parent=35 // pred_fallthru
          _
      $region36: #{conv_bn_relu.1} parent=31 // pred_fallthru
        _
      %p1289 = scmp.eq.s32.totalorder %s18, 1
      // Predicated region
      $region45: #{conv_bn_relu.1} parent=31 // pred_check
        %p1290 = pneg %p1289
      $region46: #{conv_bn_relu.1} parent=31 // pred_check_branch
        %1292 = sbr.rel (%p1290) target = $region48
      $region47: #{conv_bn_relu.1} parent=31 // pred_region
        %s1293 = scalar_lea.vmem [#allocation2], %s205
        %v1294 = vld [vmem:[%s1293] sm:$0xff]
        %v1295 = vld [vmem:[%s1293 + $0x8] sm:$0xff]
        %v1296 = vld [vmem:[%s1293 + $0x10] sm:$0xff]
        %v1297 = vld [vmem:[%s1293 + $0x18] sm:$0xff]
        %v1298 = vld [vmem:[%s1293 + $0x20] sm:$0xff]
        %v1299 = vld [vmem:[%s1293 + $0x28] sm:$0xff]
        %v1300 = vld [vmem:[%s1293 + $0x30] sm:$0xff]
        %v1301 = vld [vmem:[%s1293 + $0x38] sm:$0xff]
        %v1302 = vld [vmem:[%s1293 + $0x40] sm:$0xff]
        %v1303 = vld [vmem:[%s1293 + $0x48] sm:$0xff]
        %v1304 = vld [vmem:[%s1293 + $0x50] sm:$0xff]
        %v1305 = vld [vmem:[%s1293 + $0x58] sm:$0xff]
        %v1306 = vld [vmem:[%s1293 + $0x60] sm:$0xff]
        %v1307 = vld [vmem:[%s1293 + $0x68] sm:$0xff]
        %v1308 = vld [vmem:[%s1293 + $0x70] sm:$0xff]
        %v1309 = vld [vmem:[%s1293 + $0x78] sm:$0xff]
        %v1310 = vld [vmem:[%s1293 + $0x80] sm:$0xff]
        %v1311 = vld [vmem:[%s1293 + $0x88] sm:$0xff]
        %v1312 = vld [vmem:[%s1293 + $0x90] sm:$0xff]
        %v1313 = vld [vmem:[%s1293 + $0x98] sm:$0xff]
        %v1314 = vld [vmem:[%s1293 + $0xa0] sm:$0xff]
        %v1315 = vld [vmem:[%s1293 + $0xa8] sm:$0xff]
        %v1316 = vld [vmem:[%s1293 + $0xb0] sm:$0xff]
        %v1317 = vld [vmem:[%s1293 + $0xb8] sm:$0xff]
        %v1318 = vld [vmem:[%s1293 + $0xc0] sm:$0xff]
        %v1319 = vld [vmem:[%s1293 + $0xc8] sm:$0xff]
        %v1320 = vld [vmem:[%s1293 + $0xd0] sm:$0xff]
        %v1321 = vld [vmem:[%s1293 + $0xd8] sm:$0xff]
        %v1322 = vld [vmem:[%s1293 + $0xe0] sm:$0xff]
        %v1323 = vld [vmem:[%s1293 + $0xe8] sm:$0xff]
        %v1324 = vld [vmem:[%s1293 + $0xf0] sm:$0xff]
        %v1325 = vld [vmem:[%s1293 + $0xf8] sm:$0xff]
        %v1326 = vld [vmem:[%s1293 + $0x100] sm:$0xff]
        %v1327 = vld [vmem:[%s1293 + $0x108] sm:$0xff]
        %v1328 = vld [vmem:[%s1293 + $0x110] sm:$0xff]
        %v1329 = vld [vmem:[%s1293 + $0x118] sm:$0xff]
        %v1330 = vld [vmem:[%s1293 + $0x120] sm:$0xff]
        %v1331 = vld [vmem:[%s1293 + $0x128] sm:$0xff]
        %v1332 = vld [vmem:[%s1293 + $0x130] sm:$0xff]
        %v1333 = vld [vmem:[%s1293 + $0x138] sm:$0xff]
        %v1334 = vld [vmem:[%s1293 + $0x140] sm:$0xff]
        %v1335 = vld [vmem:[%s1293 + $0x148] sm:$0xff]
        %v1336 = vld [vmem:[%s1293 + $0x150] sm:$0xff]
        %v1337 = vld [vmem:[%s1293 + $0x158] sm:$0xff]
        %v1338 = vld [vmem:[%s1293 + $0x160] sm:$0xff]
        %v1339 = vld [vmem:[%s1293 + $0x168] sm:$0xff]
        %v1340 = vld [vmem:[%s1293 + $0x170] sm:$0xff]
        %v1341 = vld [vmem:[%s1293 + $0x178] sm:$0xff]
        %v1342 = vld [vmem:[%s1293 + $0x180] sm:$0xff]
        %v1343 = vld [vmem:[%s1293 + $0x188] sm:$0xff]
        %v1344 = vld [vmem:[%s1293 + $0x190] sm:$0xff]
        %v1345 = vld [vmem:[%s1293 + $0x198] sm:$0xff]
        %v1346 = vld [vmem:[%s1293 + $0x1a0] sm:$0xff]
        %v1347 = vld [vmem:[%s1293 + $0x1a8] sm:$0xff]
        %v1348 = vld [vmem:[%s1293 + $0x1b0] sm:$0xff]
        %v1349 = vld [vmem:[%s1293 + $0x1b8] sm:$0xff]
        %v1350 = vld [vmem:[%s1293 + $0x1c0] sm:$0xff]
        %v1351 = vld [vmem:[%s1293 + $0x1c8] sm:$0xff]
        %v1352 = vld [vmem:[%s1293 + $0x1d0] sm:$0xff]
        %v1353 = vld [vmem:[%s1293 + $0x1d8] sm:$0xff]
        %v1354 = vld [vmem:[%s1293 + $0x1e0] sm:$0xff]
        %v1355 = vld [vmem:[%s1293 + $0x1e8] sm:$0xff]
        %v1356 = vld [vmem:[%s1293 + $0x1f0] sm:$0xff]
        %v1357 = vld [vmem:[%s1293 + $0x1f8] sm:$0xff]
        %v1358 = vld [vmem:[#allocation4] sm:$0x1]
        %v1359 = vlaneseq
        %v1360 = vshrl.u32 %v1359, 7
        %v1361 = vsub.s32 0, %v1360
        %v1362 = vrot.slane %v1358, %v1361
        %v1363 = vmul.f32 %v1294, %v1362
        %v1364 = vmul.f32 %v1295, %v1362
        %v1365 = vmul.f32 %v1296, %v1362
        %v1366 = vmul.f32 %v1297, %v1362
        %v1367 = vmul.f32 %v1298, %v1362
        %v1368 = vmul.f32 %v1299, %v1362
        %v1369 = vmul.f32 %v1300, %v1362
        %v1370 = vmul.f32 %v1301, %v1362
        %v1371 = vmul.f32 %v1302, %v1362
        %v1372 = vmul.f32 %v1303, %v1362
        %v1373 = vmul.f32 %v1304, %v1362
        %v1374 = vmul.f32 %v1305, %v1362
        %v1375 = vmul.f32 %v1306, %v1362
        %v1376 = vmul.f32 %v1307, %v1362
        %v1377 = vmul.f32 %v1308, %v1362
        %v1378 = vmul.f32 %v1309, %v1362
        %v1379 = vmul.f32 %v1310, %v1362
        %v1380 = vmul.f32 %v1311, %v1362
        %v1381 = vmul.f32 %v1312, %v1362
        %v1382 = vmul.f32 %v1313, %v1362
        %v1383 = vmul.f32 %v1314, %v1362
        %v1384 = vmul.f32 %v1315, %v1362
        %v1385 = vmul.f32 %v1316, %v1362
        %v1386 = vmul.f32 %v1317, %v1362
        %v1387 = vmul.f32 %v1318, %v1362
        %v1388 = vmul.f32 %v1319, %v1362
        %v1389 = vmul.f32 %v1320, %v1362
        %v1390 = vmul.f32 %v1321, %v1362
        %v1391 = vmul.f32 %v1322, %v1362
        %v1392 = vmul.f32 %v1323, %v1362
        %v1393 = vmul.f32 %v1324, %v1362
        %v1394 = vmul.f32 %v1325, %v1362
        %v1395 = vmul.f32 %v1326, %v1362
        %v1396 = vmul.f32 %v1327, %v1362
        %v1397 = vmul.f32 %v1328, %v1362
        %v1398 = vmul.f32 %v1329, %v1362
        %v1399 = vmul.f32 %v1330, %v1362
        %v1400 = vmul.f32 %v1331, %v1362
        %v1401 = vmul.f32 %v1332, %v1362
        %v1402 = vmul.f32 %v1333, %v1362
        %v1403 = vmul.f32 %v1334, %v1362
        %v1404 = vmul.f32 %v1335, %v1362
        %v1405 = vmul.f32 %v1336, %v1362
        %v1406 = vmul.f32 %v1337, %v1362
        %v1407 = vmul.f32 %v1338, %v1362
        %v1408 = vmul.f32 %v1339, %v1362
        %v1409 = vmul.f32 %v1340, %v1362
        %v1410 = vmul.f32 %v1341, %v1362
        %v1411 = vmul.f32 %v1342, %v1362
        %v1412 = vmul.f32 %v1343, %v1362
        %v1413 = vmul.f32 %v1344, %v1362
        %v1414 = vmul.f32 %v1345, %v1362
        %v1415 = vmul.f32 %v1346, %v1362
        %v1416 = vmul.f32 %v1347, %v1362
        %v1417 = vmul.f32 %v1348, %v1362
        %v1418 = vmul.f32 %v1349, %v1362
        %v1419 = vmul.f32 %v1350, %v1362
        %v1420 = vmul.f32 %v1351, %v1362
        %v1421 = vmul.f32 %v1352, %v1362
        %v1422 = vmul.f32 %v1353, %v1362
        %v1423 = vmul.f32 %v1354, %v1362
        %v1424 = vmul.f32 %v1355, %v1362
        %v1425 = vmul.f32 %v1356, %v1362
        %v1426 = vmul.f32 %v1357, %v1362
        %v1427 = vld [vmem:[#allocation4 + $0x1] sm:$0x1]
        %v1428 = vlaneseq
        %v1429 = vshrl.u32 %v1428, 7
        %v1430 = vsub.s32 0, %v1429
        %v1431 = vrot.slane %v1427, %v1430
        %v1432 = vadd.f32 %v1363, %v1431
        %v1433 = vadd.f32 %v1364, %v1431
        %v1434 = vadd.f32 %v1365, %v1431
        %v1435 = vadd.f32 %v1366, %v1431
        %v1436 = vadd.f32 %v1367, %v1431
        %v1437 = vadd.f32 %v1368, %v1431
        %v1438 = vadd.f32 %v1369, %v1431
        %v1439 = vadd.f32 %v1370, %v1431
        %v1440 = vadd.f32 %v1371, %v1431
        %v1441 = vadd.f32 %v1372, %v1431
        %v1442 = vadd.f32 %v1373, %v1431
        %v1443 = vadd.f32 %v1374, %v1431
        %v1444 = vadd.f32 %v1375, %v1431
        %v1445 = vadd.f32 %v1376, %v1431
        %v1446 = vadd.f32 %v1377, %v1431
        %v1447 = vadd.f32 %v1378, %v1431
        %v1448 = vadd.f32 %v1379, %v1431
        %v1449 = vadd.f32 %v1380, %v1431
        %v1450 = vadd.f32 %v1381, %v1431
        %v1451 = vadd.f32 %v1382, %v1431
        %v1452 = vadd.f32 %v1383, %v1431
        %v1453 = vadd.f32 %v1384, %v1431
        %v1454 = vadd.f32 %v1385, %v1431
        %v1455 = vadd.f32 %v1386, %v1431
        %v1456 = vadd.f32 %v1387, %v1431
        %v1457 = vadd.f32 %v1388, %v1431
        %v1458 = vadd.f32 %v1389, %v1431
        %v1459 = vadd.f32 %v1390, %v1431
        %v1460 = vadd.f32 %v1391, %v1431
        %v1461 = vadd.f32 %v1392, %v1431
        %v1462 = vadd.f32 %v1393, %v1431
        %v1463 = vadd.f32 %v1394, %v1431
        %v1464 = vadd.f32 %v1395, %v1431
        %v1465 = vadd.f32 %v1396, %v1431
        %v1466 = vadd.f32 %v1397, %v1431
        %v1467 = vadd.f32 %v1398, %v1431
        %v1468 = vadd.f32 %v1399, %v1431
        %v1469 = vadd.f32 %v1400, %v1431
        %v1470 = vadd.f32 %v1401, %v1431
        %v1471 = vadd.f32 %v1402, %v1431
        %v1472 = vadd.f32 %v1403, %v1431
        %v1473 = vadd.f32 %v1404, %v1431
        %v1474 = vadd.f32 %v1405, %v1431
        %v1475 = vadd.f32 %v1406, %v1431
        %v1476 = vadd.f32 %v1407, %v1431
        %v1477 = vadd.f32 %v1408, %v1431
        %v1478 = vadd.f32 %v1409, %v1431
        %v1479 = vadd.f32 %v1410, %v1431
        %v1480 = vadd.f32 %v1411, %v1431
        %v1481 = vadd.f32 %v1412, %v1431
        %v1482 = vadd.f32 %v1413, %v1431
        %v1483 = vadd.f32 %v1414, %v1431
        %v1484 = vadd.f32 %v1415, %v1431
        %v1485 = vadd.f32 %v1416, %v1431
        %v1486 = vadd.f32 %v1417, %v1431
        %v1487 = vadd.f32 %v1418, %v1431
        %v1488 = vadd.f32 %v1419, %v1431
        %v1489 = vadd.f32 %v1420, %v1431
        %v1490 = vadd.f32 %v1421, %v1431
        %v1491 = vadd.f32 %v1422, %v1431
        %v1492 = vadd.f32 %v1423, %v1431
        %v1493 = vadd.f32 %v1424, %v1431
        %v1494 = vadd.f32 %v1425, %v1431
        %v1495 = vadd.f32 %v1426, %v1431
        %v1496 = vmax.f32 %v1432, 0.0
        %v1497 = vmax.f32 %v1433, 0.0
        %v1498 = vmax.f32 %v1434, 0.0
        %v1499 = vmax.f32 %v1435, 0.0
        %v1500 = vmax.f32 %v1436, 0.0
        %v1501 = vmax.f32 %v1437, 0.0
        %v1502 = vmax.f32 %v1438, 0.0
        %v1503 = vmax.f32 %v1439, 0.0
        %v1504 = vmax.f32 %v1440, 0.0
        %v1505 = vmax.f32 %v1441, 0.0
        %v1506 = vmax.f32 %v1442, 0.0
        %v1507 = vmax.f32 %v1443, 0.0
        %v1508 = vmax.f32 %v1444, 0.0
        %v1509 = vmax.f32 %v1445, 0.0
        %v1510 = vmax.f32 %v1446, 0.0
        %v1511 = vmax.f32 %v1447, 0.0
        %v1512 = vmax.f32 %v1448, 0.0
        %v1513 = vmax.f32 %v1449, 0.0
        %v1514 = vmax.f32 %v1450, 0.0
        %v1515 = vmax.f32 %v1451, 0.0
        %v1516 = vmax.f32 %v1452, 0.0
        %v1517 = vmax.f32 %v1453, 0.0
        %v1518 = vmax.f32 %v1454, 0.0
        %v1519 = vmax.f32 %v1455, 0.0
        %v1520 = vmax.f32 %v1456, 0.0
        %v1521 = vmax.f32 %v1457, 0.0
        %v1522 = vmax.f32 %v1458, 0.0
        %v1523 = vmax.f32 %v1459, 0.0
        %v1524 = vmax.f32 %v1460, 0.0
        %v1525 = vmax.f32 %v1461, 0.0
        %v1526 = vmax.f32 %v1462, 0.0
        %v1527 = vmax.f32 %v1463, 0.0
        %v1528 = vmax.f32 %v1464, 0.0
        %v1529 = vmax.f32 %v1465, 0.0
        %v1530 = vmax.f32 %v1466, 0.0
        %v1531 = vmax.f32 %v1467, 0.0
        %v1532 = vmax.f32 %v1468, 0.0
        %v1533 = vmax.f32 %v1469, 0.0
        %v1534 = vmax.f32 %v1470, 0.0
        %v1535 = vmax.f32 %v1471, 0.0
        %v1536 = vmax.f32 %v1472, 0.0
        %v1537 = vmax.f32 %v1473, 0.0
        %v1538 = vmax.f32 %v1474, 0.0
        %v1539 = vmax.f32 %v1475, 0.0
        %v1540 = vmax.f32 %v1476, 0.0
        %v1541 = vmax.f32 %v1477, 0.0
        %v1542 = vmax.f32 %v1478, 0.0
        %v1543 = vmax.f32 %v1479, 0.0
        %v1544 = vmax.f32 %v1480, 0.0
        %v1545 = vmax.f32 %v1481, 0.0
        %v1546 = vmax.f32 %v1482, 0.0
        %v1547 = vmax.f32 %v1483, 0.0
        %v1548 = vmax.f32 %v1484, 0.0
        %v1549 = vmax.f32 %v1485, 0.0
        %v1550 = vmax.f32 %v1486, 0.0
        %v1551 = vmax.f32 %v1487, 0.0
        %v1552 = vmax.f32 %v1488, 0.0
        %v1553 = vmax.f32 %v1489, 0.0
        %v1554 = vmax.f32 %v1490, 0.0
        %v1555 = vmax.f32 %v1491, 0.0
        %v1556 = vmax.f32 %v1492, 0.0
        %v1557 = vmax.f32 %v1493, 0.0
        %v1558 = vmax.f32 %v1494, 0.0
        %v1559 = vmax.f32 %v1495, 0.0
        %1560 = vst [vmem:[%s202] sm:$0xff] %v1496
        %1561 = vst [vmem:[%s202 + $0x8] sm:$0xff] %v1497
        %1562 = vst [vmem:[%s202 + $0x10] sm:$0xff] %v1498
        %1563 = vst [vmem:[%s202 + $0x18] sm:$0xff] %v1499
        %1564 = vst [vmem:[%s202 + $0x20] sm:$0xff] %v1500
        %1565 = vst [vmem:[%s202 + $0x28] sm:$0xff] %v1501
        %1566 = vst [vmem:[%s202 + $0x30] sm:$0xff] %v1502
        %1567 = vst [vmem:[%s202 + $0x38] sm:$0xff] %v1503
        %1568 = vst [vmem:[%s202 + $0x40] sm:$0xff] %v1504
        %1569 = vst [vmem:[%s202 + $0x48] sm:$0xff] %v1505
        %1570 = vst [vmem:[%s202 + $0x50] sm:$0xff] %v1506
        %1571 = vst [vmem:[%s202 + $0x58] sm:$0xff] %v1507
        %1572 = vst [vmem:[%s202 + $0x60] sm:$0xff] %v1508
        %1573 = vst [vmem:[%s202 + $0x68] sm:$0xff] %v1509
        %1574 = vst [vmem:[%s202 + $0x70] sm:$0xff] %v1510
        %1575 = vst [vmem:[%s202 + $0x78] sm:$0xff] %v1511
        %1576 = vst [vmem:[%s202 + $0x80] sm:$0xff] %v1512
        %1577 = vst [vmem:[%s202 + $0x88] sm:$0xff] %v1513
        %1578 = vst [vmem:[%s202 + $0x90] sm:$0xff] %v1514
        %1579 = vst [vmem:[%s202 + $0x98] sm:$0xff] %v1515
        %1580 = vst [vmem:[%s202 + $0xa0] sm:$0xff] %v1516
        %1581 = vst [vmem:[%s202 + $0xa8] sm:$0xff] %v1517
        %1582 = vst [vmem:[%s202 + $0xb0] sm:$0xff] %v1518
        %1583 = vst [vmem:[%s202 + $0xb8] sm:$0xff] %v1519
        %1584 = vst [vmem:[%s202 + $0xc0] sm:$0xff] %v1520
        %1585 = vst [vmem:[%s202 + $0xc8] sm:$0xff] %v1521
        %1586 = vst [vmem:[%s202 + $0xd0] sm:$0xff] %v1522
        %1587 = vst [vmem:[%s202 + $0xd8] sm:$0xff] %v1523
        %1588 = vst [vmem:[%s202 + $0xe0] sm:$0xff] %v1524
        %1589 = vst [vmem:[%s202 + $0xe8] sm:$0xff] %v1525
        %1590 = vst [vmem:[%s202 + $0xf0] sm:$0xff] %v1526
        %1591 = vst [vmem:[%s202 + $0xf8] sm:$0xff] %v1527
        %1592 = vst [vmem:[%s202 + $0x100] sm:$0xff] %v1528
        %1593 = vst [vmem:[%s202 + $0x108] sm:$0xff] %v1529
        %1594 = vst [vmem:[%s202 + $0x110] sm:$0xff] %v1530
        %1595 = vst [vmem:[%s202 + $0x118] sm:$0xff] %v1531
        %1596 = vst [vmem:[%s202 + $0x120] sm:$0xff] %v1532
        %1597 = vst [vmem:[%s202 + $0x128] sm:$0xff] %v1533
        %1598 = vst [vmem:[%s202 + $0x130] sm:$0xff] %v1534
        %1599 = vst [vmem:[%s202 + $0x138] sm:$0xff] %v1535
        %1600 = vst [vmem:[%s202 + $0x140] sm:$0xff] %v1536
        %1601 = vst [vmem:[%s202 + $0x148] sm:$0xff] %v1537
        %1602 = vst [vmem:[%s202 + $0x150] sm:$0xff] %v1538
        %1603 = vst [vmem:[%s202 + $0x158] sm:$0xff] %v1539
        %1604 = vst [vmem:[%s202 + $0x160] sm:$0xff] %v1540
        %1605 = vst [vmem:[%s202 + $0x168] sm:$0xff] %v1541
        %1606 = vst [vmem:[%s202 + $0x170] sm:$0xff] %v1542
        %1607 = vst [vmem:[%s202 + $0x178] sm:$0xff] %v1543
        %1608 = vst [vmem:[%s202 + $0x180] sm:$0xff] %v1544
        %1609 = vst [vmem:[%s202 + $0x188] sm:$0xff] %v1545
        %1610 = vst [vmem:[%s202 + $0x190] sm:$0xff] %v1546
        %1611 = vst [vmem:[%s202 + $0x198] sm:$0xff] %v1547
        %1612 = vst [vmem:[%s202 + $0x1a0] sm:$0xff] %v1548
        %1613 = vst [vmem:[%s202 + $0x1a8] sm:$0xff] %v1549
        %1614 = vst [vmem:[%s202 + $0x1b0] sm:$0xff] %v1550
        %1615 = vst [vmem:[%s202 + $0x1b8] sm:$0xff] %v1551
        %1616 = vst [vmem:[%s202 + $0x1c0] sm:$0xff] %v1552
        %1617 = vst [vmem:[%s202 + $0x1c8] sm:$0xff] %v1553
        %1618 = vst [vmem:[%s202 + $0x1d0] sm:$0xff] %v1554
        %1619 = vst [vmem:[%s202 + $0x1d8] sm:$0xff] %v1555
        %1620 = vst [vmem:[%s202 + $0x1e0] sm:$0xff] %v1556
        %1621 = vst [vmem:[%s202 + $0x1e8] sm:$0xff] %v1557
        %1622 = vst [vmem:[%s202 + $0x1f0] sm:$0xff] %v1558
        %1623 = vst [vmem:[%s202 + $0x1f8] sm:$0xff] %v1559
      $region48: #{conv_bn_relu.1} parent=31 // pred_fallthru
        _
      %s1624 = smul.u32 %s19, %s18
      %s1625 = smul.u32 64, %s1624
      %p1626 = scmp.lt.s32.totalorder %s1625, 63
      %s1627 = scalar_select %p1626, %s1625, 63
      %s1628 = smul.addr %s1627, 8
      %s1629 = scalar_lea.vmem %s3, %s1628
      // Predicated region
      $region49: #{conv_bn_relu.1} parent=31 // pred_check
        %p1630 = pneg %p118
      $region50: #{conv_bn_relu.1} parent=31 // pred_check_branch
        %1632 = sbr.rel (%p1630) target = $region52
      $region51: #{conv_bn_relu.1} parent=31 // pred_region
        %s1633 = smul.u32 %s19, %s18
        %s1634 = smul.u32 64, %s1633
      $region52: #{conv_bn_relu.1} parent=31 // pred_fallthru
        _
    $region32: #{conv_bn_relu.1} parent=5 // pred_fallthru
      _
    %p1635 = scmp.le.s32.totalorder 2, %s9
    // Predicated region
    $region53: #{conv_bn_relu.1} parent=5 // pred_check
      %p1636 = pneg %p1635
    $region54: #{conv_bn_relu.1} parent=5 // pred_check_branch
      %1638 = sbr.rel (%p1636) target = $region56
    $region55: #{conv_bn_relu.1} parent=5 // pred_region
      %s1639 = ssub.s32 %s9, 2
      // Predicated region
      $region57: #{conv_bn_relu.1} parent=55 // pred_check
        %p1640 = pneg %p124
      $region58: #{conv_bn_relu.1} parent=55 // pred_check_branch
        %1642 = sbr.rel (%p1640) target = $region60
      $region59: #{conv_bn_relu.1} parent=55 // pred_region
        %s1643 = smul.u32 %s21, %s20
        %s1644 = smul.u32 64, %s1643
        %p1645 = scmp.lt.s32.totalorder %s1644, 63
        %s1646 = scalar_select %p1645, %s1644, 63
        %s1647 = smul.addr %s1646, 8
        %s1648 = scalar_lea.vmem %s3, %s1647
      $region60: #{conv_bn_relu.1} parent=55 // pred_fallthru
        _
    $region56: #{conv_bn_relu.1} parent=5 // pred_fallthru
      _
  $region6: #{conv_bn_relu.1} parent=0 // loop_footer
    %s13 = sadd.s32 1, %s9
  $region7: #{conv_bn_relu.1} parent=0 // loop_footer_branch
    %8 = sbr.rel target = $region3
  $region8: #{conv_bn_relu.1} parent=0 // loop_exit
    _

</llo_original>
